<compile_context>
chip_gen: v7x
topology: tpu7x:2x2x1
jax: 0.10.0
libtpu: 0.0.40
codegen_flags: <defaults>
</compile_context>

<pallas_src>
import math

import jax
import jax.numpy as jnp
from jax.experimental import pallas as pl
from jax.experimental.pallas import tpu as pltpu

# ---- small, module-consistent sizes ----
BATCH = 2
SEQ = 8
HIDDEN = 32
HEADS = 4
HEAD_DIM = HIDDEN // HEADS
INTERMEDIATE = 128
LN_EPS = 1e-12


def _layernorm_fp32(x, w, b):
    # Fp32LayerNorm: two-pass variance ((x - mu)^2) for numerical parity.
    x32 = x.astype(jnp.float32)
    mu = jnp.mean(x32, axis=-1, keepdims=True)
    d = x32 - mu
    var = jnp.mean(d * d, axis=-1, keepdims=True)
    return d * jax.lax.rsqrt(var + LN_EPS) * w + b


def _gelu_exact(x):
    # torch.nn.functional.gelu default (erf-based, exact).
    return 0.5 * x * (1.0 + jax.lax.erf(x * (1.0 / math.sqrt(2.0))))


def _make_kernel(return_probs):
    def kernel(x_ref,                       # (BB, S, H)
               wqkv_ref,                    # (H, 3H)  Q columns pre-scaled
               wo_ref,                      # (H, H)
               wi_ref,                      # (H, I)
               wout_ref,                    # (I, H)
               vech_ref,                    # (6, H): ln1w,ln1b,ln2w,ln2b,bo,bout
               bqkv_ref,                    # (1, 3H) Q part pre-scaled
               bi_ref,                      # (1, I)
               *out_refs):
        if return_probs:
            y_ref, probs_ref = out_refs
        else:
            (y_ref,) = out_refs

        BB, S, H = x_ref.shape
        x = x_ref[...].reshape(BB * S, H)            # fold batch into matmul rows

        ln1w, ln1b = vech_ref[0], vech_ref[1]
        ln2w, ln2b = vech_ref[2], vech_ref[3]
        bo, bout = vech_ref[4], vech_ref[5]

        # layernorm_before
        hs = _layernorm_fp32(x, ln1w, ln1b)

        # fused Q/K/V projection (single MXU op, 96/128 output lanes used);
        # 1/sqrt(head_dim) already folded into the Q weight/bias columns.
        qkv = jnp.dot(hs, wqkv_ref[...],
                      preferred_element_type=jnp.float32) + bqkv_ref[0]
        q, k, v = qkv[:, :H], qkv[:, H:2 * H], qkv[:, 2 * H:]

        def split_heads(t):                          # (BB*S, H) -> (BB*HEADS, S, d)
            return (t.reshape(BB, S, HEADS, HEAD_DIM)
                     .transpose(0, 2, 1, 3)
                     .reshape(BB * HEADS, S, HEAD_DIM))

        qh, kh, vh = split_heads(q), split_heads(k), split_heads(v)

        # batched-head attention: one dot_general pair over the collapsed
        # (batch*heads) dim, one softmax, one probs store.
        scores = jnp.einsum("bqd,bkd->bqk", qh, kh,
                            preferred_element_type=jnp.float32)   # (BB*HEADS,S,S)
        m = jnp.max(scores, axis=-1, keepdims=True)
        e = jnp.exp(scores - m)
        probs = e / jnp.sum(e, axis=-1, keepdims=True)

        if return_probs:
            probs_ref[...] = probs.reshape(BB, HEADS, S, S)

        ctx = jnp.einsum("bqk,bkd->bqd", probs, vh,
                         preferred_element_type=jnp.float32)      # (BB*HEADS,S,d)
        ctx = (ctx.reshape(BB, HEADS, S, HEAD_DIM)
                  .transpose(0, 2, 1, 3)
                  .reshape(BB * S, H))

        # attention output projection + residual (dropout p=0.0 -> identity)
        attn_out = jnp.dot(ctx, wo_ref[...],
                           preferred_element_type=jnp.float32) + bo
        h1 = attn_out + x

        # layernorm_after + MLP + residual
        ln2 = _layernorm_fp32(h1, ln2w, ln2b)
        inter = jnp.dot(ln2, wi_ref[...],
                        preferred_element_type=jnp.float32) + bi_ref[0]
        inter = _gelu_exact(inter)
        out = jnp.dot(inter, wout_ref[...],
                      preferred_element_type=jnp.float32) + bout

        y_ref[...] = (out + h1).reshape(BB, S, H)

    return kernel


def flava_transformer_layer(x, packed, *, return_probs=True, block_batch=None):
    B, S, H = x.shape
    # Keep the whole batch in one block (grid=(1,)); at these sizes splitting
    # across TensorCores duplicates all weight DMAs for no compute benefit.
    BB = B if block_batch is None else block_batch
    assert B % BB == 0
    grid = (B // BB,)

    weights = [packed["w_qkv"], packed["wo"], packed["wi"], packed["wout"],
               packed["vec_h"], packed["b_qkv"], packed["bi"]]

    def full_spec(arr):
        nd = arr.ndim
        return pl.BlockSpec(arr.shape, lambda b, _nd=nd: (0,) * _nd)

    in_specs = [pl.BlockSpec((BB, S, H), lambda b: (b, 0, 0))]
    in_specs += [full_spec(a) for a in weights]

    y_spec = pl.BlockSpec((BB, S, H), lambda b: (b, 0, 0))
    y_shape = jax.ShapeDtypeStruct((B, S, H), jnp.float32)

    if return_probs:
        out_specs = (y_spec,
                     pl.BlockSpec((BB, HEADS, S, S), lambda b: (b, 0, 0, 0)))
        out_shape = (y_shape,
                     jax.ShapeDtypeStruct((B, HEADS, S, S), jnp.float32))
    else:
        out_specs = y_spec
        out_shape = y_shape

    return pl.pallas_call(
        _make_kernel(return_probs),
        grid=grid,
        in_specs=in_specs,
        out_specs=out_specs,
        out_shape=out_shape,
        compiler_params=pltpu.CompilerParams(dimension_semantics=("parallel",)),
    )(x, *weights)


def init_params(key):
    """Unfused, module-shaped params (also consumed by the pure-JAX reference)."""
    ks = iter(jax.random.split(key, 32))

    def lin(in_dim, out_dim):
        w = jax.random.normal(next(ks), (in_dim, out_dim), jnp.float32) * 0.02
        b = jax.random.normal(next(ks), (1, out_dim), jnp.float32) * 0.02
        return w, b

    p = {}
    p["ln1w"] = 1.0 + 0.01 * jax.random.normal(next(ks), (1, HIDDEN), jnp.float32)
    p["ln1b"] = 0.01 * jax.random.normal(next(ks), (1, HIDDEN), jnp.float32)
    p["wq"], p["bq"] = lin(HIDDEN, HIDDEN)
    p["wk"], p["bk"] = lin(HIDDEN, HIDDEN)
    p["wv"], p["bv"] = lin(HIDDEN, HIDDEN)
    p["wo"], p["bo"] = lin(HIDDEN, HIDDEN)
    p["ln2w"] = 1.0 + 0.01 * jax.random.normal(next(ks), (1, HIDDEN), jnp.float32)
    p["ln2b"] = 0.01 * jax.random.normal(next(ks), (1, HIDDEN), jnp.float32)
    p["wi"], p["bi"] = lin(HIDDEN, INTERMEDIATE)
    p["wout"], p["bout"] = lin(INTERMEDIATE, HIDDEN)
    return p


def pack_params(p):
    """Param-prep-time fusion/packing: fused QKV (Q pre-scaled) + packed vectors."""
    scale = 1.0 / math.sqrt(HEAD_DIM)
    w_qkv = jnp.concatenate([p["wq"] * scale, p["wk"], p["wv"]], axis=1)   # (H, 3H)
    b_qkv = jnp.concatenate([p["bq"] * scale, p["bk"], p["bv"]], axis=1)   # (1, 3H)
    vec_h = jnp.concatenate([p["ln1w"], p["ln1b"], p["ln2w"], p["ln2b"],
                             p["bo"], p["bout"]], axis=0)                  # (6, H)
    return {
        "w_qkv": w_qkv,
        "b_qkv": b_qkv,
        "wo": p["wo"],
        "wi": p["wi"],
        "wout": p["wout"],
        "bi": p["bi"],
        "vec_h": vec_h,
    }


def reference(x, p):
    """Pure-JAX mirror of the PyTorch forward (for correctness check)."""
    def ln(v, w, b):
        mu = v.mean(-1, keepdims=True)
        var = ((v - mu) ** 2).mean(-1, keepdims=True)
        return (v - mu) / jnp.sqrt(var + LN_EPS) * w + b

    B, S, H = x.shape
    hs = ln(x, p["ln1w"][0], p["ln1b"][0])
    q = hs @ p["wq"] + p["bq"][0]
    k = hs @ p["wk"] + p["bk"][0]
    v = hs @ p["wv"] + p["bv"][0]

    def split(t):
        return t.reshape(B, S, HEADS, HEAD_DIM).transpose(0, 2, 1, 3)

    qh, kh, vh = split(q), split(k), split(v)
    scores = jnp.einsum("bhqd,bhkd->bhqk", qh, kh) / math.sqrt(HEAD_DIM)
    probs = jax.nn.softmax(scores, axis=-1)
    ctx = jnp.einsum("bhqk,bhkd->bhqd", probs, vh)
    ctx = ctx.transpose(0, 2, 1, 3).reshape(B, S, H)
    attn = ctx @ p["wo"] + p["bo"][0]
    h1 = attn + x
    ln2 = ln(h1, p["ln2w"][0], p["ln2b"][0])
    inter = jax.nn.gelu(ln2 @ p["wi"] + p["bi"][0], approximate=False)
    out = inter @ p["wout"] + p["bout"][0]
    return out + h1, probs


if __name__ == "__main__":
    key = jax.random.PRNGKey(0)
    kx, kp = jax.random.split(key)
    x = jax.random.normal(kx, (BATCH, SEQ, HIDDEN), jnp.float32)
    params = init_params(kp)
    packed = pack_params(params)

    y, probs = flava_transformer_layer(x, packed)
    y = jax.block_until_ready(y)
    probs = jax.block_until_ready(probs)

    y_ref, probs_ref = reference(x, params)
    assert jnp.allclose(y, y_ref, atol=1e-4, rtol=1e-4), "layer output mismatch"
    assert jnp.allclose(probs, probs_ref, atol=1e-5, rtol=1e-5), "attention probs mismatch"

    # probs-off path (no attention writeback)
    y_only = flava_transformer_layer(x, packed, return_probs=False)
    y_only = jax.block_until_ready(y_only)
    assert jnp.allclose(y_only, y_ref, atol=1e-4, rtol=1e-4), "probs-off output mismatch"

    print("KERNEL_OK")
</pallas_src>

<mosaic_0001>
module attributes {stable_mosaic.version = 11 : i64} {
  func.func @kernel(%arg0: i32, %arg1: memref<2x8x32xf32, #tpu.memory_space<vmem>>, %arg2: memref<32x96xf32, #tpu.memory_space<vmem>>, %arg3: memref<32x32xf32, #tpu.memory_space<vmem>>, %arg4: memref<32x128xf32, #tpu.memory_space<vmem>>, %arg5: memref<128x32xf32, #tpu.memory_space<vmem>>, %arg6: memref<6x32xf32, #tpu.memory_space<vmem>>, %arg7: memref<1x96xf32, #tpu.memory_space<vmem>>, %arg8: memref<1x128xf32, #tpu.memory_space<vmem>>, %arg9: memref<2x8x32xf32, #tpu.memory_space<vmem>>, %arg10: memref<2x4x8x8xf32, #tpu.memory_space<vmem>>) attributes {dimension_semantics = [#tpu.dimension_semantics<parallel>], iteration_bounds = array<i64: 1>, scalar_prefetch = 0 : i64, scratch_operands = 0 : i64, tpu.core_type = #tpu.core_type<tc>, window_params = [{transform_indices = @transform_0, window_bounds = array<i64: 2, 8, 32>}, {pipeline_mode = #tpu.pipeline_mode<synchronous>, transform_indices = @transform_1, window_bounds = array<i64: 32, 96>}, {pipeline_mode = #tpu.pipeline_mode<synchronous>, transform_indices = @transform_2, window_bounds = array<i64: 32, 32>}, {pipeline_mode = #tpu.pipeline_mode<synchronous>, transform_indices = @transform_3, window_bounds = array<i64: 32, 128>}, {pipeline_mode = #tpu.pipeline_mode<synchronous>, transform_indices = @transform_4, window_bounds = array<i64: 128, 32>}, {pipeline_mode = #tpu.pipeline_mode<synchronous>, transform_indices = @transform_5, window_bounds = array<i64: 6, 32>}, {pipeline_mode = #tpu.pipeline_mode<synchronous>, transform_indices = @transform_6, window_bounds = array<i64: 1, 96>}, {pipeline_mode = #tpu.pipeline_mode<synchronous>, transform_indices = @transform_7, window_bounds = array<i64: 1, 128>}, {transform_indices = @transform_8, window_bounds = array<i64: 2, 8, 32>}, {transform_indices = @transform_9, window_bounds = array<i64: 2, 4, 8, 8>}]} {
    %c0 = arith.constant 0 : index
    %c0_0 = arith.constant 0 : index
    %c0_1 = arith.constant 0 : index
    %0 = vector.load %arg1[%c0, %c0_0, %c0_1] : memref<2x8x32xf32, #tpu.memory_space<vmem>>, vector<2x8x32xf32>
    %1 = vector.shape_cast %0 : vector<2x8x32xf32> to vector<16x32xf32>
    %c0_2 = arith.constant 0 : index
    %c0_3 = arith.constant 0 : index
    %2 = vector.load %arg6[%c0_2, %c0_3] : memref<6x32xf32, #tpu.memory_space<vmem>>, vector<1x32xf32>
    %3 = vector.shape_cast %2 : vector<1x32xf32> to vector<32xf32>
    %c1 = arith.constant 1 : index
    %c0_4 = arith.constant 0 : index
    %4 = vector.load %arg6[%c1, %c0_4] : memref<6x32xf32, #tpu.memory_space<vmem>>, vector<1x32xf32>
    %5 = vector.shape_cast %4 : vector<1x32xf32> to vector<32xf32>
    %c2 = arith.constant 2 : index
    %c0_5 = arith.constant 0 : index
    %6 = vector.load %arg6[%c2, %c0_5] : memref<6x32xf32, #tpu.memory_space<vmem>>, vector<1x32xf32>
    %7 = vector.shape_cast %6 : vector<1x32xf32> to vector<32xf32>
    %c3 = arith.constant 3 : index
    %c0_6 = arith.constant 0 : index
    %8 = vector.load %arg6[%c3, %c0_6] : memref<6x32xf32, #tpu.memory_space<vmem>>, vector<1x32xf32>
    %9 = vector.shape_cast %8 : vector<1x32xf32> to vector<32xf32>
    %c4 = arith.constant 4 : index
    %c0_7 = arith.constant 0 : index
    %10 = vector.load %arg6[%c4, %c0_7] : memref<6x32xf32, #tpu.memory_space<vmem>>, vector<1x32xf32>
    %11 = vector.shape_cast %10 : vector<1x32xf32> to vector<32xf32>
    %c5 = arith.constant 5 : index
    %c0_8 = arith.constant 0 : index
    %12 = vector.load %arg6[%c5, %c0_8] : memref<6x32xf32, #tpu.memory_space<vmem>>, vector<1x32xf32>
    %13 = vector.shape_cast %12 : vector<1x32xf32> to vector<32xf32>
    %cst = arith.constant dense<0.000000e+00> : vector<16xf32>
    %14 = vector.multi_reduction <add>, %1, %cst [1] : vector<16x32xf32> to vector<16xf32>
    %15 = vector.shape_cast %14 : vector<16xf32> to vector<16x1xf32>
    %cst_9 = arith.constant 3.200000e+01 : f32
    %16 = vector.broadcast %cst_9 : f32 to vector<16x1xf32>
    %17 = arith.divf %15, %16 : vector<16x1xf32>
    %18 = vector.broadcast %17 : vector<16x1xf32> to vector<16x32xf32>
    %19 = arith.subf %1, %18 : vector<16x32xf32>
    %20 = arith.mulf %19, %19 : vector<16x32xf32>
    %cst_10 = arith.constant dense<0.000000e+00> : vector<16xf32>
    %21 = vector.multi_reduction <add>, %20, %cst_10 [1] : vector<16x32xf32> to vector<16xf32>
    %22 = vector.shape_cast %21 : vector<16xf32> to vector<16x1xf32>
    %cst_11 = arith.constant 3.200000e+01 : f32
    %23 = vector.broadcast %cst_11 : f32 to vector<16x1xf32>
    %24 = arith.divf %22, %23 : vector<16x1xf32>
    %cst_12 = arith.constant 9.99999996E-13 : f32
    %25 = vector.broadcast %cst_12 : f32 to vector<16x1xf32>
    %26 = arith.addf %24, %25 : vector<16x1xf32>
    %27 = math.rsqrt %26 : vector<16x1xf32>
    %28 = vector.broadcast %27 : vector<16x1xf32> to vector<16x32xf32>
    %29 = arith.mulf %19, %28 : vector<16x32xf32>
    %30 = vector.shape_cast %3 : vector<32xf32> to vector<1x32xf32>
    %31 = vector.broadcast %30 : vector<1x32xf32> to vector<16x32xf32>
    %32 = arith.mulf %29, %31 : vector<16x32xf32>
    %33 = vector.shape_cast %5 : vector<32xf32> to vector<1x32xf32>
    %34 = vector.broadcast %33 : vector<1x32xf32> to vector<16x32xf32>
    %35 = arith.addf %32, %34 : vector<16x32xf32>
    %c0_13 = arith.constant 0 : index
    %c0_14 = arith.constant 0 : index
    %36 = vector.load %arg2[%c0_13, %c0_14] : memref<32x96xf32, #tpu.memory_space<vmem>>, vector<32x96xf32>
    %cst_15 = arith.constant dense<0.000000e+00> : vector<16x96xf32>
    %37 = tpu.matmul %35, %36, %cst_15 {dimension_numbers = #tpu.dot_dimension_numbers<[1], [0], [0], [1], [0, 0, 1, 1], [], []>} : vector<16x32xf32>, vector<32x96xf32>, vector<16x96xf32> -> vector<16x96xf32>
    %c0_16 = arith.constant 0 : index
    %c0_17 = arith.constant 0 : index
    %38 = vector.load %arg7[%c0_16, %c0_17] : memref<1x96xf32, #tpu.memory_space<vmem>>, vector<1x96xf32>
    %39 = vector.shape_cast %38 : vector<1x96xf32> to vector<96xf32>
    %40 = vector.shape_cast %39 : vector<96xf32> to vector<1x96xf32>
    %41 = vector.broadcast %40 : vector<1x96xf32> to vector<16x96xf32>
    %42 = arith.addf %37, %41 : vector<16x96xf32>
    %43 = vector.extract_strided_slice %42 {offsets = [0, 0], sizes = [16, 32], strides = [1, 1]} : vector<16x96xf32> to vector<16x32xf32>
    %44 = vector.extract_strided_slice %42 {offsets = [0, 32], sizes = [16, 32], strides = [1, 1]} : vector<16x96xf32> to vector<16x32xf32>
    %45 = vector.extract_strided_slice %42 {offsets = [0, 64], sizes = [16, 32], strides = [1, 1]} : vector<16x96xf32> to vector<16x32xf32>
    %46 = vector.shape_cast %43 : vector<16x32xf32> to vector<2x8x4x8xf32>
    %47 = tpu.transpose %46, [0, 2, 1, 3] : vector<2x8x4x8xf32> -> vector<2x4x8x8xf32>
    %48 = vector.shape_cast %47 : vector<2x4x8x8xf32> to vector<8x8x8xf32>
    %49 = vector.shape_cast %44 : vector<16x32xf32> to vector<2x8x4x8xf32>
    %50 = tpu.transpose %49, [0, 2, 1, 3] : vector<2x8x4x8xf32> -> vector<2x4x8x8xf32>
    %51 = vector.shape_cast %50 : vector<2x4x8x8xf32> to vector<8x8x8xf32>
    %52 = vector.shape_cast %45 : vector<16x32xf32> to vector<2x8x4x8xf32>
    %53 = tpu.transpose %52, [0, 2, 1, 3] : vector<2x8x4x8xf32> -> vector<2x4x8x8xf32>
    %54 = vector.shape_cast %53 : vector<2x4x8x8xf32> to vector<8x8x8xf32>
    "tpu.trace_start"() <{level = 10 : i32, message = "bqd,bkd->bqk"}> : () -> ()
    %cst_18 = arith.constant dense<0.000000e+00> : vector<8x8x8xf32>
    %55 = tpu.matmul %48, %51, %cst_18 {dimension_numbers = #tpu.dot_dimension_numbers<[2], [2], [1], [1], [0, 0, 0, 1, 1, 1], [0], [0]>} : vector<8x8x8xf32>, vector<8x8x8xf32>, vector<8x8x8xf32> -> vector<8x8x8xf32>
    "tpu.trace_stop"() : () -> ()
    %cst_19 = arith.constant dense<0xFF800000> : vector<8x8xf32>
    %56 = vector.multi_reduction <maximumf>, %55, %cst_19 [2] : vector<8x8x8xf32> to vector<8x8xf32>
    %57 = vector.shape_cast %56 : vector<8x8xf32> to vector<8x8x1xf32>
    %58 = vector.broadcast %57 : vector<8x8x1xf32> to vector<8x8x8xf32>
    %59 = arith.subf %55, %58 : vector<8x8x8xf32>
    %60 = math.exp %59 : vector<8x8x8xf32>
    %cst_20 = arith.constant dense<0.000000e+00> : vector<8x8xf32>
    %61 = vector.multi_reduction <add>, %60, %cst_20 [2] : vector<8x8x8xf32> to vector<8x8xf32>
    %62 = vector.shape_cast %61 : vector<8x8xf32> to vector<8x8x1xf32>
    %63 = vector.broadcast %62 : vector<8x8x1xf32> to vector<8x8x8xf32>
    %64 = arith.divf %60, %63 : vector<8x8x8xf32>
    %65 = vector.shape_cast %64 : vector<8x8x8xf32> to vector<2x4x8x8xf32>
    %c0_21 = arith.constant 0 : index
    %c0_22 = arith.constant 0 : index
    %c0_23 = arith.constant 0 : index
    %c0_24 = arith.constant 0 : index
    %66 = vector.load %arg10[%c0_21, %c0_22, %c0_23, %c0_24] : memref<2x4x8x8xf32, #tpu.memory_space<vmem>>, vector<2x4x8x8xf32>
    tpu.vector_store %arg10[%c0_21, %c0_22, %c0_23, %c0_24], %65 {strides = array<i32>} : memref<2x4x8x8xf32, #tpu.memory_space<vmem>>, vector<2x4x8x8xf32>,
    "tpu.trace_start"() <{level = 10 : i32, message = "bqk,bkd->bqd"}> : () -> ()
    %cst_25 = arith.constant dense<0.000000e+00> : vector<8x8x8xf32>
    %67 = tpu.matmul %64, %54, %cst_25 {dimension_numbers = #tpu.dot_dimension_numbers<[2], [1], [1], [2], [0, 0, 0, 1, 1, 2], [0], [0]>} : vector<8x8x8xf32>, vector<8x8x8xf32>, vector<8x8x8xf32> -> vector<8x8x8xf32>
    "tpu.trace_stop"() : () -> ()
    %68 = vector.shape_cast %67 : vector<8x8x8xf32> to vector<2x4x8x8xf32>
    %69 = tpu.transpose %68, [0, 2, 1, 3] : vector<2x4x8x8xf32> -> vector<2x8x4x8xf32>
    %70 = vector.shape_cast %69 : vector<2x8x4x8xf32> to vector<16x32xf32>
    %c0_26 = arith.constant 0 : index
    %c0_27 = arith.constant 0 : index
    %71 = vector.load %arg3[%c0_26, %c0_27] : memref<32x32xf32, #tpu.memory_space<vmem>>, vector<32x32xf32>
    %cst_28 = arith.constant dense<0.000000e+00> : vector<16x32xf32>
    %72 = tpu.matmul %70, %71, %cst_28 {dimension_numbers = #tpu.dot_dimension_numbers<[1], [0], [0], [1], [0, 0, 1, 1], [], []>} : vector<16x32xf32>, vector<32x32xf32>, vector<16x32xf32> -> vector<16x32xf32>
    %73 = vector.shape_cast %11 : vector<32xf32> to vector<1x32xf32>
    %74 = vector.broadcast %73 : vector<1x32xf32> to vector<16x32xf32>
    %75 = arith.addf %72, %74 : vector<16x32xf32>
    %76 = arith.addf %75, %1 : vector<16x32xf32>
    %cst_29 = arith.constant dense<0.000000e+00> : vector<16xf32>
    %77 = vector.multi_reduction <add>, %76, %cst_29 [1] : vector<16x32xf32> to vector<16xf32>
    %78 = vector.shape_cast %77 : vector<16xf32> to vector<16x1xf32>
    %cst_30 = arith.constant 3.200000e+01 : f32
    %79 = vector.broadcast %cst_30 : f32 to vector<16x1xf32>
    %80 = arith.divf %78, %79 : vector<16x1xf32>
    %81 = vector.broadcast %80 : vector<16x1xf32> to vector<16x32xf32>
    %82 = arith.subf %76, %81 : vector<16x32xf32>
    %83 = arith.mulf %82, %82 : vector<16x32xf32>
    %cst_31 = arith.constant dense<0.000000e+00> : vector<16xf32>
    %84 = vector.multi_reduction <add>, %83, %cst_31 [1] : vector<16x32xf32> to vector<16xf32>
    %85 = vector.shape_cast %84 : vector<16xf32> to vector<16x1xf32>
    %cst_32 = arith.constant 3.200000e+01 : f32
    %86 = vector.broadcast %cst_32 : f32 to vector<16x1xf32>
    %87 = arith.divf %85, %86 : vector<16x1xf32>
    %cst_33 = arith.constant 9.99999996E-13 : f32
    %88 = vector.broadcast %cst_33 : f32 to vector<16x1xf32>
    %89 = arith.addf %87, %88 : vector<16x1xf32>
    %90 = math.rsqrt %89 : vector<16x1xf32>
    %91 = vector.broadcast %90 : vector<16x1xf32> to vector<16x32xf32>
    %92 = arith.mulf %82, %91 : vector<16x32xf32>
    %93 = vector.shape_cast %7 : vector<32xf32> to vector<1x32xf32>
    %94 = vector.broadcast %93 : vector<1x32xf32> to vector<16x32xf32>
    %95 = arith.mulf %92, %94 : vector<16x32xf32>
    %96 = vector.shape_cast %9 : vector<32xf32> to vector<1x32xf32>
    %97 = vector.broadcast %96 : vector<1x32xf32> to vector<16x32xf32>
    %98 = arith.addf %95, %97 : vector<16x32xf32>
    %c0_34 = arith.constant 0 : index
    %c0_35 = arith.constant 0 : index
    %99 = vector.load %arg4[%c0_34, %c0_35] : memref<32x128xf32, #tpu.memory_space<vmem>>, vector<32x128xf32>
    %cst_36 = arith.constant dense<0.000000e+00> : vector<16x128xf32>
    %100 = tpu.matmul %98, %99, %cst_36 {dimension_numbers = #tpu.dot_dimension_numbers<[1], [0], [0], [1], [0, 0, 1, 1], [], []>} : vector<16x32xf32>, vector<32x128xf32>, vector<16x128xf32> -> vector<16x128xf32>
    %c0_37 = arith.constant 0 : index
    %c0_38 = arith.constant 0 : index
    %101 = vector.load %arg8[%c0_37, %c0_38] : memref<1x128xf32, #tpu.memory_space<vmem>>, vector<1x128xf32>
    %102 = vector.shape_cast %101 : vector<1x128xf32> to vector<128xf32>
    %103 = vector.shape_cast %102 : vector<128xf32> to vector<1x128xf32>
    %104 = vector.broadcast %103 : vector<1x128xf32> to vector<16x128xf32>
    %105 = arith.addf %100, %104 : vector<16x128xf32>
    %cst_39 = arith.constant 5.000000e-01 : f32
    %106 = vector.broadcast %cst_39 : f32 to vector<16x128xf32>
    %107 = arith.mulf %106, %105 : vector<16x128xf32>
    %cst_40 = arith.constant 0.707106769 : f32
    %108 = vector.broadcast %cst_40 : f32 to vector<16x128xf32>
    %109 = arith.mulf %105, %108 : vector<16x128xf32>
    %110 = math.erf %109 : vector<16x128xf32>
    %cst_41 = arith.constant 1.000000e+00 : f32
    %111 = vector.broadcast %cst_41 : f32 to vector<16x128xf32>
    %112 = arith.addf %111, %110 : vector<16x128xf32>
    %113 = arith.mulf %107, %112 : vector<16x128xf32>
    %c0_42 = arith.constant 0 : index
    %c0_43 = arith.constant 0 : index
    %114 = vector.load %arg5[%c0_42, %c0_43] : memref<128x32xf32, #tpu.memory_space<vmem>>, vector<128x32xf32>
    %cst_44 = arith.constant dense<0.000000e+00> : vector<16x32xf32>
    %115 = tpu.matmul %113, %114, %cst_44 {dimension_numbers = #tpu.dot_dimension_numbers<[1], [0], [0], [1], [0, 0, 1, 1], [], []>} : vector<16x128xf32>, vector<128x32xf32>, vector<16x32xf32> -> vector<16x32xf32>
    %116 = vector.shape_cast %13 : vector<32xf32> to vector<1x32xf32>
    %117 = vector.broadcast %116 : vector<1x32xf32> to vector<16x32xf32>
    %118 = arith.addf %115, %117 : vector<16x32xf32>
    %119 = arith.addf %118, %76 : vector<16x32xf32>
    %120 = vector.shape_cast %119 : vector<16x32xf32> to vector<2x8x32xf32>
    %c0_45 = arith.constant 0 : index
    %c0_46 = arith.constant 0 : index
    %c0_47 = arith.constant 0 : index
    %121 = vector.load %arg9[%c0_45, %c0_46, %c0_47] : memref<2x8x32xf32, #tpu.memory_space<vmem>>, vector<2x8x32xf32>
    tpu.vector_store %arg9[%c0_45, %c0_46, %c0_47], %120 {strides = array<i32>} : memref<2x8x32xf32, #tpu.memory_space<vmem>>, vector<2x8x32xf32>,
    return
  }
  func.func @transform_0(%arg0: i32) -> (i32, i32, i32) {
    %c0_i32 = arith.constant 0 : i32
    %c0_i32_0 = arith.constant 0 : i32
    %c0_i32_1 = arith.constant 0 : i32
    return %arg0, %c0_i32, %c0_i32_0 : i32, i32, i32
  }
  func.func @transform_1(%arg0: i32) -> (i32, i32) {
    %c0_i32 = arith.constant 0 : i32
    %c0_i32_0 = arith.constant 0 : i32
    %c0_i32_1 = arith.constant 0 : i32
    return %c0_i32, %c0_i32_0 : i32, i32
  }
  func.func @transform_2(%arg0: i32) -> (i32, i32) {
    %c0_i32 = arith.constant 0 : i32
    %c0_i32_0 = arith.constant 0 : i32
    %c0_i32_1 = arith.constant 0 : i32
    return %c0_i32, %c0_i32_0 : i32, i32
  }
  func.func @transform_3(%arg0: i32) -> (i32, i32) {
    %c0_i32 = arith.constant 0 : i32
    %c0_i32_0 = arith.constant 0 : i32
    %c0_i32_1 = arith.constant 0 : i32
    return %c0_i32, %c0_i32_0 : i32, i32
  }
  func.func @transform_4(%arg0: i32) -> (i32, i32) {
    %c0_i32 = arith.constant 0 : i32
    %c0_i32_0 = arith.constant 0 : i32
    %c0_i32_1 = arith.constant 0 : i32
    return %c0_i32, %c0_i32_0 : i32, i32
  }
  func.func @transform_5(%arg0: i32) -> (i32, i32) {
    %c0_i32 = arith.constant 0 : i32
    %c0_i32_0 = arith.constant 0 : i32
    %c0_i32_1 = arith.constant 0 : i32
    return %c0_i32, %c0_i32_0 : i32, i32
  }
  func.func @transform_6(%arg0: i32) -> (i32, i32) {
    %c0_i32 = arith.constant 0 : i32
    %c0_i32_0 = arith.constant 0 : i32
    %c0_i32_1 = arith.constant 0 : i32
    return %c0_i32, %c0_i32_0 : i32, i32
  }
  func.func @transform_7(%arg0: i32) -> (i32, i32) {
    %c0_i32 = arith.constant 0 : i32
    %c0_i32_0 = arith.constant 0 : i32
    %c0_i32_1 = arith.constant 0 : i32
    return %c0_i32, %c0_i32_0 : i32, i32
  }
  func.func @transform_8(%arg0: i32) -> (i32, i32, i32) {
    %c0_i32 = arith.constant 0 : i32
    %c0_i32_0 = arith.constant 0 : i32
    %c0_i32_1 = arith.constant 0 : i32
    return %arg0, %c0_i32, %c0_i32_0 : i32, i32, i32
  }
  func.func @transform_9(%arg0: i32) -> (i32, i32, i32, i32) {
    %c0_i32 = arith.constant 0 : i32
    %c0_i32_0 = arith.constant 0 : i32
    %c0_i32_1 = arith.constant 0 : i32
    %c0_i32_2 = arith.constant 0 : i32
    return %arg0, %c0_i32, %c0_i32_0, %c0_i32_1 : i32, i32, i32, i32
  }
}

</mosaic_0001>

<llo_original>
// kernel: tpu_custom_call.1
$region0: #{tpu_custom_call.1}
  #allocation0 [shape = 'u32[]', space=smem, size = 0x4, offset = 0x4, fixed_abs, tag = 'smem constant byte address 0x4 - core index']
  #allocation1 [shape = 'u32[144,128]{1,0:T(1,128)}', space=vmem, size = 0x12000, scoped, tag = 'internal scratch']
  %s0 = inlined_call_operand.vmem [shape: f32[2,8,32], index: 0, kind: input, shape index: {}]
  %s1 = inlined_call_operand.vmem [shape: f32[32,96], index: 1, kind: input, shape index: {}]
  %s2 = inlined_call_operand.vmem [shape: f32[32,32], index: 2, kind: input, shape index: {}]
  %s3 = inlined_call_operand.vmem [shape: f32[32,128], index: 3, kind: input, shape index: {}]
  %s4 = inlined_call_operand.vmem [shape: f32[128,32], index: 4, kind: input, shape index: {}]
  %s5 = inlined_call_operand.vmem [shape: f32[6,32], index: 5, kind: input, shape index: {}]
  %s6 = inlined_call_operand.vmem [shape: f32[1,96], index: 6, kind: input, shape index: {}]
  %s7 = inlined_call_operand.vmem [shape: f32[1,128], index: 7, kind: input, shape index: {}]
  %s8 = inlined_call_operand.hbm [shape: f32[2,8,32], index: 8, kind: output, shape index: {0}]
  %s9 = inlined_call_operand.hbm [shape: f32[2,4,8,8], index: 9, kind: output, shape index: {1}]
  %10 = xla_tuple %s8, %s9
  %s11 = sld [smem:[#allocation0]]
  $region50: #{tpu_custom_call.1} parent=0
    _
  %s13 = ssub.s32 1, %s11
  %s14 = scalar_select 0, %s13, %s11
  $region1: #{tpu_custom_call.1} parent=0
    #allocation2 [shape = 'u8[8192]{0}', space=vmem, size = 0x2000, scoped, tag = 'output window, operand 0, single buffered']
    #allocation3 [shape = 's32[1]{0}', space=sflag, size = 0x4, scoped, tag = 'scoped memory for tpu_custom_call.1']
    #allocation4 [shape = 'u8[32768]{0}', space=vmem, size = 0x8000, scoped, tag = 'output window, operand 1, single buffered']
    #allocation5 [shape = 's32[1]{0}', space=sflag, size = 0x4, scoped, tag = 'scoped memory for tpu_custom_call.1']
    %15 = vsyncpa [#allocation3], 0
    %16 = vsyncpa [#allocation5], 0
    // Predicated region
    $region2: #{tpu_custom_call.1} parent=1 // pred_check
      _
    $region3: #{tpu_custom_call.1} parent=1 // pred_check_branch
      %18 = sbr.rel (0) target = $region5
    $region4: #{tpu_custom_call.1} parent=1 // pred_region
      _
    $region5: #{tpu_custom_call.1} parent=1 // pred_fallthru
      _
    // Predicated region
    $region6: #{tpu_custom_call.1} parent=1 // pred_check
      _
    $region7: #{tpu_custom_call.1} parent=1 // pred_check_branch
      %20 = sbr.rel (0) target = $region9
    $region8: #{tpu_custom_call.1} parent=1 // pred_region
      _
    $region9: #{tpu_custom_call.1} parent=1 // pred_fallthru
      _
    // Predicated region
    $region10: #{tpu_custom_call.1} parent=1 // pred_check
      _
    $region11: #{tpu_custom_call.1} parent=1 // pred_check_branch
      %22 = sbr.rel (0) target = $region13
    $region12: #{tpu_custom_call.1} parent=1 // pred_region
      _
    $region13: #{tpu_custom_call.1} parent=1 // pred_fallthru
      _
    // Predicated region
    $region14: #{tpu_custom_call.1} parent=1 // pred_check
      _
    $region15: #{tpu_custom_call.1} parent=1 // pred_check_branch
      %24 = sbr.rel (0) target = $region17
    $region16: #{tpu_custom_call.1} parent=1 // pred_region
      _
    $region17: #{tpu_custom_call.1} parent=1 // pred_fallthru
      _
    // Predicated region
    $region18: #{tpu_custom_call.1} parent=1 // pred_check
      _
    $region19: #{tpu_custom_call.1} parent=1 // pred_check_branch
      %26 = sbr.rel (0) target = $region21
    $region20: #{tpu_custom_call.1} parent=1 // pred_region
      _
    $region21: #{tpu_custom_call.1} parent=1 // pred_fallthru
      _
    // Predicated region
    $region22: #{tpu_custom_call.1} parent=1 // pred_check
      _
    $region23: #{tpu_custom_call.1} parent=1 // pred_check_branch
      %28 = sbr.rel (0) target = $region25
    $region24: #{tpu_custom_call.1} parent=1 // pred_region
      _
    $region25: #{tpu_custom_call.1} parent=1 // pred_fallthru
      _
    // Predicated region
    $region26: #{tpu_custom_call.1} parent=1 // pred_check
      _
    $region27: #{tpu_custom_call.1} parent=1 // pred_check_branch
      %30 = sbr.rel (0) target = $region29
    $region28: #{tpu_custom_call.1} parent=1 // pred_region
      _
    $region29: #{tpu_custom_call.1} parent=1 // pred_fallthru
      _
    // Predicated region
    $region30: #{tpu_custom_call.1} parent=1 // pred_check
      _
    $region31: #{tpu_custom_call.1} parent=1 // pred_check_branch
      %32 = sbr.rel (0) target = $region33
    $region32: #{tpu_custom_call.1} parent=1 // pred_region
      _
    $region33: #{tpu_custom_call.1} parent=1 // pred_fallthru
      _
    %v33 = vld [vmem:[%s0] sm:$0xff]
    %v34 = vld [vmem:[%s0 + $0x8] sm:$0xff]
    %v35 = vld [vmem:[%s5] sm:$0x1]
    %v36 = vld [vmem:[%s5 + $0x1] sm:$0x1]
    %v37 = vld [vmem:[%s5 + $0x2] sm:$0x1]
    %v38 = vld [vmem:[%s5 + $0x3] sm:$0x1]
    %v39 = vld [vmem:[%s5 + $0x4] sm:$0x1]
    %v40 = vld [vmem:[%s5 + $0x5] sm:$0x1]
    %vm41 = vcmask 261120
    %v42 = vsel %vm41, %v33, 0.0
    %43 = vadd.xlane.f32.xlu0 %v42
    %v44 = vpop.xlane.xlu0 %43
    %v45 = vsel %vm41, %v34, 0.0
    %46 = vadd.xlane.f32.xlu0 %v45
    %v47 = vpop.xlane.xlu0 %46
    %v48 = vrcp.pop 32.0
    %v49 = vmul.f32 %v44, %v48
    %v50 = vmul.f32 %v47, %v48
    %v51 = vsub.f32 %v33, %v49
    %v52 = vsub.f32 %v34, %v50
    %v53 = vmul.f32 %v51, %v51
    %v54 = vmul.f32 %v52, %v52
    %v55 = vsel %vm41, %v53, 0.0
    %56 = vadd.xlane.f32.xlu0 %v55
    %v57 = vpop.xlane.xlu0 %56
    %v58 = vsel %vm41, %v54, 0.0
    %59 = vadd.xlane.f32.xlu0 %v58
    %v60 = vpop.xlane.xlu0 %59
    %v61 = vmul.f32 %v57, %v48
    %v62 = vmul.f32 %v60, %v48
    %v63 = vadd.f32 %v61, 1e-12
    %v64 = vadd.f32 %v62, 1e-12
    %v65 = vrsqrt.pop %v63
    %v66 = vrsqrt.pop %v64
    %v67 = vmul.f32 %v51, %v65
    %v68 = vmul.f32 %v52, %v66
    %v69 = vlaneseq
    %v70 = vshrl.u32 %v69, 7
    %v71 = vsub.s32 0, %v70
    %v72 = vrot.slane %v35, %v71
    %v73 = vmul.f32 %v67, %v72
    %v74 = vmul.f32 %v68, %v72
    %v75 = vlaneseq
    %v76 = vshrl.u32 %v75, 7
    %v77 = vsub.s32 0, %v76
    %v78 = vrot.slane %v36, %v77
    %v79 = vadd.f32 %v73, %v78
    %v80 = vadd.f32 %v74, %v78
    %v81 = vld [vmem:[%s1] sm:$0xff]
    %v82 = vld [vmem:[%s1 + $0x8] sm:$0xff]
    %v83 = vld [vmem:[%s1 + $0x10] sm:$0xff]
    %v84 = vld [vmem:[%s1 + $0x18] sm:$0xff]
    %v85 = vld [vmem:[%s6] sm:$0x1]
    %v87 = vlaneseq
    %v88 = vshrl.u32 %v87, 7
    %v89 = vsub.s32 0, %v88
    %v90 = vrot.slane %v85, %v89
    %v93 = vsel %vm41, %v79, 0
    %v96 = vsel %vm41, %v80, 0
    %98 = vmatprep.subr.mxu0 0.0
    %99 = vmatpush1.msra.mxu0 %v81
    %100 = vmatprep.subr.mxu0 0.0
    %101 = vmatpush1.msra.mxu0 %v82
    %102 = vmatprep.subr.mxu0 0.0
    %103 = vmatpush1.msra.mxu0 %v83
    %104 = vmatprep.subr.mxu0 0.0
    %105 = vmatpush1.msra.mxu0 %v84
    %106 = vmatprep.subr.mxu0 0.0
    %107 = vmatpush1.msra.mxu0 0.0
    %108 = vmatprep.subr.mxu0 0.0
    %109 = vmatpush1.msra.mxu0 0.0
    %110 = vmatprep.subr.mxu0 0.0
    %111 = vmatpush1.msra.mxu0 0.0
    %112 = vmatprep.subr.mxu0 0.0
    %113 = vmatpush1.msra.mxu0 0.0
    %114 = vmatprep.subr.mxu0 0.0
    %115 = vmatpush1.msra.mxu0 0.0
    %116 = vmatprep.subr.mxu0 0.0
    %117 = vmatpush1.msra.mxu0 0.0
    %118 = vmatprep.subr.mxu0 0.0
    %119 = vmatpush1.msra.mxu0 0.0
    %120 = vmatprep.subr.mxu0 0.0
    %121 = vmatpush1.msra.mxu0 0.0
    %122 = vmatprep.subr.mxu0 0.0
    %123 = vmatpush1.msra.mxu0 0.0
    %124 = vmatprep.subr.mxu0 0.0
    %125 = vmatpush1.msra.mxu0 0.0
    %126 = vmatprep.subr.mxu0 0.0
    %127 = vmatpush1.msra.mxu0 0.0
    %128 = vmatprep.subr.mxu0 0.0
    %129 = vmatpush1.msra.mxu0 0.0
    %130 = vmatprep.subr.mxu0 0.0
    %131 = vmatpush1.msra.mxu0 0.0
    %132 = vmatprep.subr.mxu0 0.0
    %133 = vmatpush1.msra.mxu0 0.0
    %134 = vmatprep.subr.mxu0 0.0
    %135 = vmatpush1.msra.mxu0 0.0
    %136 = vmatprep.subr.mxu0 0.0
    %137 = vmatpush1.msra.mxu0 0.0
    %138 = vmatprep.subr.mxu0 0.0
    %139 = vmatpush1.msra.mxu0 0.0
    %140 = vmatprep.subr.mxu0 0.0
    %141 = vmatpush1.msra.mxu0 0.0
    %142 = vmatprep.subr.mxu0 0.0
    %143 = vmatpush1.msra.mxu0 0.0
    %144 = vmatprep.subr.mxu0 0.0
    %145 = vmatpush1.msra.mxu0 0.0
    %146 = vmatprep.subr.mxu0 0.0
    %147 = vmatpush1.msra.mxu0 0.0
    %148 = vmatprep.subr.mxu0 0.0
    %149 = vmatpush1.msra.mxu0 0.0
    %150 = vmatprep.subr.mxu0 0.0
    %151 = vmatpush1.msra.mxu0 0.0
    %152 = vmatprep.subr.mxu0 0.0
    %153 = vmatpush1.msra.mxu0 0.0
    %154 = vmatprep.subr.mxu0 0.0
    %155 = vmatpush1.msra.mxu0 0.0
    %156 = vmatprep.subr.mxu0 0.0
    %157 = vmatpush1.msra.mxu0 0.0
    %158 = vmatprep.subr.mxu0 0.0
    %159 = vmatpush1.msra.mxu0 0.0
    %160 = vmatprep.subr.mxu0 0.0
    %161 = vmatpush1.msra.mxu0 0.0
    %162 = vmatprep.mubr.f32.mxu0 0.0
    %163 = vmatmul.mubr.f32.gmra.mrb[0].mxu0 %v93
    %v164 = vpop.f32.mrb[0].mxu0
    %v165 = vadd.f32 %v90, %v164
    %v166 = vpop.f32.mrb[0].mxu0
    %167 = vmatprep.mubr.f32.mxu0 0.0
    %168 = vmatmul.mubr.f32.gmra.mrb[0].mxu0 %v96
    %v169 = vpop.f32.mrb[0].mxu0
    %v170 = vadd.f32 %v90, %v169
    %v171 = vpop.f32.mrb[0].mxu0
    %172 = vdwg.mxu0
    %175 = vrot.lane.b32.xlu0 %v165, 120
    %v176 = vpop.permute.xlu0 %175
    %177 = vrot.lane.b32.xlu0 %v170, 120
    %v178 = vpop.permute.xlu0 %177
    %181 = vrot.lane.b32.xlu0 %v165, 112
    %v182 = vpop.permute.xlu0 %181
    %183 = vrot.lane.b32.xlu0 %v170, 112
    %v184 = vpop.permute.xlu0 %183
    %187 = vrot.lane.b32.xlu0 %v165, 104
    %v188 = vpop.permute.xlu0 %187
    %189 = vrot.lane.b32.xlu0 %v170, 104
    %v190 = vpop.permute.xlu0 %189
    %v193 = vcombine.low %v165, %v182
    %v194 = vcombine.high %v165, %v182
    %v196 = vunpack.c.l.s4 1983009808
    %v197 = vunpack.c.0.s8 %v196
    %v198 = vlaneseq
    %v199 = vshrl.u32 %v198, 7
    %v200 = vsub.s32 %v197, %v199
    %v201 = vrot.slane %v193, %v200
    %v203 = vunpack.c.l.s4 1983009808
    %v204 = vunpack.c.0.s8 %v203
    %v205 = vlaneseq
    %v206 = vshrl.u32 %v205, 7
    %v207 = vsub.s32 %v204, %v206
    %v208 = vrot.slane %v194, %v207
    %v209 = vcombine.low %v176, %v188
    %v210 = vcombine.high %v176, %v188
    %v212 = vunpack.c.l.s4 1983009808
    %v213 = vunpack.c.0.s8 %v212
    %v214 = vlaneseq
    %v215 = vshrl.u32 %v214, 7
    %v216 = vsub.s32 %v213, %v215
    %v217 = vrot.slane %v209, %v216
    %v219 = vunpack.c.l.s4 1983009808
    %v220 = vunpack.c.0.s8 %v219
    %v221 = vlaneseq
    %v222 = vshrl.u32 %v221, 7
    %v223 = vsub.s32 %v220, %v222
    %v224 = vrot.slane %v210, %v223
    %v225 = vcombine.low %v201, %v217
    %v226 = vcombine.high %v201, %v217
    %v228 = vunpack.c.l.s4 1934713408
    %v229 = vunpack.c.0.s8 %v228
    %v230 = vlaneseq
    %v231 = vshrl.u32 %v230, 7
    %v232 = vsub.s32 %v229, %v231
    %v233 = vrot.slane %v225, %v232
    %v235 = vunpack.c.l.s4 1934713408
    %v236 = vunpack.c.0.s8 %v235
    %v237 = vlaneseq
    %v238 = vshrl.u32 %v237, 7
    %v239 = vsub.s32 %v236, %v238
    %v240 = vrot.slane %v226, %v239
    %v241 = vcombine.low %v208, %v224
    %v242 = vcombine.high %v208, %v224
    %v244 = vunpack.c.l.s4 1934713408
    %v245 = vunpack.c.0.s8 %v244
    %v246 = vlaneseq
    %v247 = vshrl.u32 %v246, 7
    %v248 = vsub.s32 %v245, %v247
    %v249 = vrot.slane %v241, %v248
    %v251 = vunpack.c.l.s4 1934713408
    %v252 = vunpack.c.0.s8 %v251
    %v253 = vlaneseq
    %v254 = vshrl.u32 %v253, 7
    %v255 = vsub.s32 %v252, %v254
    %v256 = vrot.slane %v242, %v255
    %v257 = vcombine.high %v233, 0.0
    %v258 = vcombine.high %v240, 0.0
    %v259 = vcombine.high %v249, 0.0
    %v260 = vcombine.high %v256, 0.0
    %v261 = vcombine.low %v170, %v184
    %v262 = vcombine.high %v170, %v184
    %v264 = vunpack.c.l.s4 1983009808
    %v265 = vunpack.c.0.s8 %v264
    %v266 = vlaneseq
    %v267 = vshrl.u32 %v266, 7
    %v268 = vsub.s32 %v265, %v267
    %v269 = vrot.slane %v261, %v268
    %v271 = vunpack.c.l.s4 1983009808
    %v272 = vunpack.c.0.s8 %v271
    %v273 = vlaneseq
    %v274 = vshrl.u32 %v273, 7
    %v275 = vsub.s32 %v272, %v274
    %v276 = vrot.slane %v262, %v275
    %v277 = vcombine.low %v178, %v190
    %v278 = vcombine.high %v178, %v190
    %v280 = vunpack.c.l.s4 1983009808
    %v281 = vunpack.c.0.s8 %v280
    %v282 = vlaneseq
    %v283 = vshrl.u32 %v282, 7
    %v284 = vsub.s32 %v281, %v283
    %v285 = vrot.slane %v277, %v284
    %v287 = vunpack.c.l.s4 1983009808
    %v288 = vunpack.c.0.s8 %v287
    %v289 = vlaneseq
    %v290 = vshrl.u32 %v289, 7
    %v291 = vsub.s32 %v288, %v290
    %v292 = vrot.slane %v278, %v291
    %v293 = vcombine.low %v269, %v285
    %v294 = vcombine.high %v269, %v285
    %v296 = vunpack.c.l.s4 1934713408
    %v297 = vunpack.c.0.s8 %v296
    %v298 = vlaneseq
    %v299 = vshrl.u32 %v298, 7
    %v300 = vsub.s32 %v297, %v299
    %v301 = vrot.slane %v293, %v300
    %v303 = vunpack.c.l.s4 1934713408
    %v304 = vunpack.c.0.s8 %v303
    %v305 = vlaneseq
    %v306 = vshrl.u32 %v305, 7
    %v307 = vsub.s32 %v304, %v306
    %v308 = vrot.slane %v294, %v307
    %v309 = vcombine.low %v276, %v292
    %v310 = vcombine.high %v276, %v292
    %v312 = vunpack.c.l.s4 1934713408
    %v313 = vunpack.c.0.s8 %v312
    %v314 = vlaneseq
    %v315 = vshrl.u32 %v314, 7
    %v316 = vsub.s32 %v313, %v315
    %v317 = vrot.slane %v309, %v316
    %v319 = vunpack.c.l.s4 1934713408
    %v320 = vunpack.c.0.s8 %v319
    %v321 = vlaneseq
    %v322 = vshrl.u32 %v321, 7
    %v323 = vsub.s32 %v320, %v322
    %v324 = vrot.slane %v310, %v323
    %v325 = vcombine.high %v301, 0.0
    %v326 = vcombine.high %v308, 0.0
    %v327 = vcombine.high %v317, 0.0
    %v328 = vcombine.high %v324, 0.0
    %v329 = vcombine.low %v233, %v240
    %v331 = vunpack.c.l.s4 1983009808
    %v332 = vunpack.c.0.s8 %v331
    %v333 = vlaneseq
    %v334 = vshrl.u32 %v333, 7
    %v335 = vsub.s32 %v332, %v334
    %v336 = vrot.slane %v329, %v335
    %v337 = vcombine.low %v257, %v258
    %v339 = vunpack.c.l.s4 1983009808
    %v340 = vunpack.c.0.s8 %v339
    %v341 = vlaneseq
    %v342 = vshrl.u32 %v341, 7
    %v343 = vsub.s32 %v340, %v342
    %v344 = vrot.slane %v337, %v343
    %v345 = vcombine.low %v249, %v256
    %v347 = vunpack.c.l.s4 1983009808
    %v348 = vunpack.c.0.s8 %v347
    %v349 = vlaneseq
    %v350 = vshrl.u32 %v349, 7
    %v351 = vsub.s32 %v348, %v350
    %v352 = vrot.slane %v345, %v351
    %v353 = vcombine.low %v259, %v260
    %v355 = vunpack.c.l.s4 1983009808
    %v356 = vunpack.c.0.s8 %v355
    %v357 = vlaneseq
    %v358 = vshrl.u32 %v357, 7
    %v359 = vsub.s32 %v356, %v358
    %v360 = vrot.slane %v353, %v359
    %v361 = vcombine.low %v336, %v344
    %v362 = vcombine.high %v336, %v344
    %v364 = vunpack.c.l.s4 1934713408
    %v365 = vunpack.c.0.s8 %v364
    %v366 = vlaneseq
    %v367 = vshrl.u32 %v366, 7
    %v368 = vsub.s32 %v365, %v367
    %v369 = vrot.slane %v361, %v368
    %v371 = vunpack.c.l.s4 1934713408
    %v372 = vunpack.c.0.s8 %v371
    %v373 = vlaneseq
    %v374 = vshrl.u32 %v373, 7
    %v375 = vsub.s32 %v372, %v374
    %v376 = vrot.slane %v362, %v375
    %v377 = vcombine.low %v352, %v360
    %v378 = vcombine.high %v352, %v360
    %v380 = vunpack.c.l.s4 1934713408
    %v381 = vunpack.c.0.s8 %v380
    %v382 = vlaneseq
    %v383 = vshrl.u32 %v382, 7
    %v384 = vsub.s32 %v381, %v383
    %v385 = vrot.slane %v377, %v384
    %v387 = vunpack.c.l.s4 1934713408
    %v388 = vunpack.c.0.s8 %v387
    %v389 = vlaneseq
    %v390 = vshrl.u32 %v389, 7
    %v391 = vsub.s32 %v388, %v390
    %v392 = vrot.slane %v378, %v391
    %v393 = vcombine.low %v369, %v385
    %v394 = vcombine.high %v369, %v385
    %v395 = vcombine.low %v376, %v392
    %v396 = vcombine.high %v376, %v392
    %v397 = vcombine.low %v301, %v308
    %v399 = vunpack.c.l.s4 1983009808
    %v400 = vunpack.c.0.s8 %v399
    %v401 = vlaneseq
    %v402 = vshrl.u32 %v401, 7
    %v403 = vsub.s32 %v400, %v402
    %v404 = vrot.slane %v397, %v403
    %v405 = vcombine.low %v325, %v326
    %v407 = vunpack.c.l.s4 1983009808
    %v408 = vunpack.c.0.s8 %v407
    %v409 = vlaneseq
    %v410 = vshrl.u32 %v409, 7
    %v411 = vsub.s32 %v408, %v410
    %v412 = vrot.slane %v405, %v411
    %v413 = vcombine.low %v317, %v324
    %v415 = vunpack.c.l.s4 1983009808
    %v416 = vunpack.c.0.s8 %v415
    %v417 = vlaneseq
    %v418 = vshrl.u32 %v417, 7
    %v419 = vsub.s32 %v416, %v418
    %v420 = vrot.slane %v413, %v419
    %v421 = vcombine.low %v327, %v328
    %v423 = vunpack.c.l.s4 1983009808
    %v424 = vunpack.c.0.s8 %v423
    %v425 = vlaneseq
    %v426 = vshrl.u32 %v425, 7
    %v427 = vsub.s32 %v424, %v426
    %v428 = vrot.slane %v421, %v427
    %v429 = vcombine.low %v404, %v412
    %v430 = vcombine.high %v404, %v412
    %v432 = vunpack.c.l.s4 1934713408
    %v433 = vunpack.c.0.s8 %v432
    %v434 = vlaneseq
    %v435 = vshrl.u32 %v434, 7
    %v436 = vsub.s32 %v433, %v435
    %v437 = vrot.slane %v429, %v436
    %v439 = vunpack.c.l.s4 1934713408
    %v440 = vunpack.c.0.s8 %v439
    %v441 = vlaneseq
    %v442 = vshrl.u32 %v441, 7
    %v443 = vsub.s32 %v440, %v442
    %v444 = vrot.slane %v430, %v443
    %v445 = vcombine.low %v420, %v428
    %v446 = vcombine.high %v420, %v428
    %v448 = vunpack.c.l.s4 1934713408
    %v449 = vunpack.c.0.s8 %v448
    %v450 = vlaneseq
    %v451 = vshrl.u32 %v450, 7
    %v452 = vsub.s32 %v449, %v451
    %v453 = vrot.slane %v445, %v452
    %v455 = vunpack.c.l.s4 1934713408
    %v456 = vunpack.c.0.s8 %v455
    %v457 = vlaneseq
    %v458 = vshrl.u32 %v457, 7
    %v459 = vsub.s32 %v456, %v458
    %v460 = vrot.slane %v446, %v459
    %v461 = vcombine.low %v437, %v453
    %v462 = vcombine.high %v437, %v453
    %v463 = vcombine.low %v444, %v460
    %v464 = vcombine.high %v444, %v460
    %465 = vrot.lane.b32.xlu0 %v165, 96
    %v466 = vpop.permute.xlu0 %465
    %467 = vrot.lane.b32.xlu0 %v170, 96
    %v468 = vpop.permute.xlu0 %467
    %469 = vrot.lane.b32.xlu0 %v176, 96
    %v470 = vpop.permute.xlu0 %469
    %471 = vrot.lane.b32.xlu0 %v178, 96
    %v472 = vpop.permute.xlu0 %471
    %473 = vrot.lane.b32.xlu0 %v182, 96
    %v474 = vpop.permute.xlu0 %473
    %475 = vrot.lane.b32.xlu0 %v184, 96
    %v476 = vpop.permute.xlu0 %475
    %477 = vrot.lane.b32.xlu0 %v188, 96
    %v478 = vpop.permute.xlu0 %477
    %479 = vrot.lane.b32.xlu0 %v190, 96
    %v480 = vpop.permute.xlu0 %479
    %v489 = vcombine.low %v466, %v474
    %v490 = vcombine.high %v466, %v474
    %v492 = vunpack.c.l.s4 1983009808
    %v493 = vunpack.c.0.s8 %v492
    %v494 = vlaneseq
    %v495 = vshrl.u32 %v494, 7
    %v496 = vsub.s32 %v493, %v495
    %v497 = vrot.slane %v489, %v496
    %v499 = vunpack.c.l.s4 1983009808
    %v500 = vunpack.c.0.s8 %v499
    %v501 = vlaneseq
    %v502 = vshrl.u32 %v501, 7
    %v503 = vsub.s32 %v500, %v502
    %v504 = vrot.slane %v490, %v503
    %v505 = vcombine.low %v470, %v478
    %v506 = vcombine.high %v470, %v478
    %v508 = vunpack.c.l.s4 1983009808
    %v509 = vunpack.c.0.s8 %v508
    %v510 = vlaneseq
    %v511 = vshrl.u32 %v510, 7
    %v512 = vsub.s32 %v509, %v511
    %v513 = vrot.slane %v505, %v512
    %v515 = vunpack.c.l.s4 1983009808
    %v516 = vunpack.c.0.s8 %v515
    %v517 = vlaneseq
    %v518 = vshrl.u32 %v517, 7
    %v519 = vsub.s32 %v516, %v518
    %v520 = vrot.slane %v506, %v519
    %v521 = vcombine.low %v497, %v513
    %v522 = vcombine.high %v497, %v513
    %v524 = vunpack.c.l.s4 1934713408
    %v525 = vunpack.c.0.s8 %v524
    %v526 = vlaneseq
    %v527 = vshrl.u32 %v526, 7
    %v528 = vsub.s32 %v525, %v527
    %v529 = vrot.slane %v521, %v528
    %v531 = vunpack.c.l.s4 1934713408
    %v532 = vunpack.c.0.s8 %v531
    %v533 = vlaneseq
    %v534 = vshrl.u32 %v533, 7
    %v535 = vsub.s32 %v532, %v534
    %v536 = vrot.slane %v522, %v535
    %v537 = vcombine.low %v504, %v520
    %v538 = vcombine.high %v504, %v520
    %v540 = vunpack.c.l.s4 1934713408
    %v541 = vunpack.c.0.s8 %v540
    %v542 = vlaneseq
    %v543 = vshrl.u32 %v542, 7
    %v544 = vsub.s32 %v541, %v543
    %v545 = vrot.slane %v537, %v544
    %v547 = vunpack.c.l.s4 1934713408
    %v548 = vunpack.c.0.s8 %v547
    %v549 = vlaneseq
    %v550 = vshrl.u32 %v549, 7
    %v551 = vsub.s32 %v548, %v550
    %v552 = vrot.slane %v538, %v551
    %v553 = vcombine.high %v529, 0.0
    %v554 = vcombine.high %v536, 0.0
    %v555 = vcombine.high %v545, 0.0
    %v556 = vcombine.high %v552, 0.0
    %v557 = vcombine.low %v468, %v476
    %v558 = vcombine.high %v468, %v476
    %v560 = vunpack.c.l.s4 1983009808
    %v561 = vunpack.c.0.s8 %v560
    %v562 = vlaneseq
    %v563 = vshrl.u32 %v562, 7
    %v564 = vsub.s32 %v561, %v563
    %v565 = vrot.slane %v557, %v564
    %v567 = vunpack.c.l.s4 1983009808
    %v568 = vunpack.c.0.s8 %v567
    %v569 = vlaneseq
    %v570 = vshrl.u32 %v569, 7
    %v571 = vsub.s32 %v568, %v570
    %v572 = vrot.slane %v558, %v571
    %v573 = vcombine.low %v472, %v480
    %v574 = vcombine.high %v472, %v480
    %v576 = vunpack.c.l.s4 1983009808
    %v577 = vunpack.c.0.s8 %v576
    %v578 = vlaneseq
    %v579 = vshrl.u32 %v578, 7
    %v580 = vsub.s32 %v577, %v579
    %v581 = vrot.slane %v573, %v580
    %v583 = vunpack.c.l.s4 1983009808
    %v584 = vunpack.c.0.s8 %v583
    %v585 = vlaneseq
    %v586 = vshrl.u32 %v585, 7
    %v587 = vsub.s32 %v584, %v586
    %v588 = vrot.slane %v574, %v587
    %v589 = vcombine.low %v565, %v581
    %v590 = vcombine.high %v565, %v581
    %v592 = vunpack.c.l.s4 1934713408
    %v593 = vunpack.c.0.s8 %v592
    %v594 = vlaneseq
    %v595 = vshrl.u32 %v594, 7
    %v596 = vsub.s32 %v593, %v595
    %v597 = vrot.slane %v589, %v596
    %v599 = vunpack.c.l.s4 1934713408
    %v600 = vunpack.c.0.s8 %v599
    %v601 = vlaneseq
    %v602 = vshrl.u32 %v601, 7
    %v603 = vsub.s32 %v600, %v602
    %v604 = vrot.slane %v590, %v603
    %v605 = vcombine.low %v572, %v588
    %v606 = vcombine.high %v572, %v588
    %v608 = vunpack.c.l.s4 1934713408
    %v609 = vunpack.c.0.s8 %v608
    %v610 = vlaneseq
    %v611 = vshrl.u32 %v610, 7
    %v612 = vsub.s32 %v609, %v611
    %v613 = vrot.slane %v605, %v612
    %v615 = vunpack.c.l.s4 1934713408
    %v616 = vunpack.c.0.s8 %v615
    %v617 = vlaneseq
    %v618 = vshrl.u32 %v617, 7
    %v619 = vsub.s32 %v616, %v618
    %v620 = vrot.slane %v606, %v619
    %v621 = vcombine.high %v597, 0.0
    %v622 = vcombine.high %v604, 0.0
    %v623 = vcombine.high %v613, 0.0
    %v624 = vcombine.high %v620, 0.0
    %v625 = vcombine.low %v529, %v536
    %v627 = vunpack.c.l.s4 1983009808
    %v628 = vunpack.c.0.s8 %v627
    %v629 = vlaneseq
    %v630 = vshrl.u32 %v629, 7
    %v631 = vsub.s32 %v628, %v630
    %v632 = vrot.slane %v625, %v631
    %v633 = vcombine.low %v553, %v554
    %v635 = vunpack.c.l.s4 1983009808
    %v636 = vunpack.c.0.s8 %v635
    %v637 = vlaneseq
    %v638 = vshrl.u32 %v637, 7
    %v639 = vsub.s32 %v636, %v638
    %v640 = vrot.slane %v633, %v639
    %v641 = vcombine.low %v545, %v552
    %v643 = vunpack.c.l.s4 1983009808
    %v644 = vunpack.c.0.s8 %v643
    %v645 = vlaneseq
    %v646 = vshrl.u32 %v645, 7
    %v647 = vsub.s32 %v644, %v646
    %v648 = vrot.slane %v641, %v647
    %v649 = vcombine.low %v555, %v556
    %v651 = vunpack.c.l.s4 1983009808
    %v652 = vunpack.c.0.s8 %v651
    %v653 = vlaneseq
    %v654 = vshrl.u32 %v653, 7
    %v655 = vsub.s32 %v652, %v654
    %v656 = vrot.slane %v649, %v655
    %v657 = vcombine.low %v632, %v640
    %v658 = vcombine.high %v632, %v640
    %v660 = vunpack.c.l.s4 1934713408
    %v661 = vunpack.c.0.s8 %v660
    %v662 = vlaneseq
    %v663 = vshrl.u32 %v662, 7
    %v664 = vsub.s32 %v661, %v663
    %v665 = vrot.slane %v657, %v664
    %v667 = vunpack.c.l.s4 1934713408
    %v668 = vunpack.c.0.s8 %v667
    %v669 = vlaneseq
    %v670 = vshrl.u32 %v669, 7
    %v671 = vsub.s32 %v668, %v670
    %v672 = vrot.slane %v658, %v671
    %v673 = vcombine.low %v648, %v656
    %v674 = vcombine.high %v648, %v656
    %v676 = vunpack.c.l.s4 1934713408
    %v677 = vunpack.c.0.s8 %v676
    %v678 = vlaneseq
    %v679 = vshrl.u32 %v678, 7
    %v680 = vsub.s32 %v677, %v679
    %v681 = vrot.slane %v673, %v680
    %v683 = vunpack.c.l.s4 1934713408
    %v684 = vunpack.c.0.s8 %v683
    %v685 = vlaneseq
    %v686 = vshrl.u32 %v685, 7
    %v687 = vsub.s32 %v684, %v686
    %v688 = vrot.slane %v674, %v687
    %v689 = vcombine.low %v665, %v681
    %v690 = vcombine.high %v665, %v681
    %v691 = vcombine.low %v672, %v688
    %v692 = vcombine.high %v672, %v688
    %v693 = vcombine.low %v597, %v604
    %v695 = vunpack.c.l.s4 1983009808
    %v696 = vunpack.c.0.s8 %v695
    %v697 = vlaneseq
    %v698 = vshrl.u32 %v697, 7
    %v699 = vsub.s32 %v696, %v698
    %v700 = vrot.slane %v693, %v699
    %v701 = vcombine.low %v621, %v622
    %v703 = vunpack.c.l.s4 1983009808
    %v704 = vunpack.c.0.s8 %v703
    %v705 = vlaneseq
    %v706 = vshrl.u32 %v705, 7
    %v707 = vsub.s32 %v704, %v706
    %v708 = vrot.slane %v701, %v707
    %v709 = vcombine.low %v613, %v620
    %v711 = vunpack.c.l.s4 1983009808
    %v712 = vunpack.c.0.s8 %v711
    %v713 = vlaneseq
    %v714 = vshrl.u32 %v713, 7
    %v715 = vsub.s32 %v712, %v714
    %v716 = vrot.slane %v709, %v715
    %v717 = vcombine.low %v623, %v624
    %v719 = vunpack.c.l.s4 1983009808
    %v720 = vunpack.c.0.s8 %v719
    %v721 = vlaneseq
    %v722 = vshrl.u32 %v721, 7
    %v723 = vsub.s32 %v720, %v722
    %v724 = vrot.slane %v717, %v723
    %v725 = vcombine.low %v700, %v708
    %v726 = vcombine.high %v700, %v708
    %v728 = vunpack.c.l.s4 1934713408
    %v729 = vunpack.c.0.s8 %v728
    %v730 = vlaneseq
    %v731 = vshrl.u32 %v730, 7
    %v732 = vsub.s32 %v729, %v731
    %v733 = vrot.slane %v725, %v732
    %v735 = vunpack.c.l.s4 1934713408
    %v736 = vunpack.c.0.s8 %v735
    %v737 = vlaneseq
    %v738 = vshrl.u32 %v737, 7
    %v739 = vsub.s32 %v736, %v738
    %v740 = vrot.slane %v726, %v739
    %v741 = vcombine.low %v716, %v724
    %v742 = vcombine.high %v716, %v724
    %v744 = vunpack.c.l.s4 1934713408
    %v745 = vunpack.c.0.s8 %v744
    %v746 = vlaneseq
    %v747 = vshrl.u32 %v746, 7
    %v748 = vsub.s32 %v745, %v747
    %v749 = vrot.slane %v741, %v748
    %v751 = vunpack.c.l.s4 1934713408
    %v752 = vunpack.c.0.s8 %v751
    %v753 = vlaneseq
    %v754 = vshrl.u32 %v753, 7
    %v755 = vsub.s32 %v752, %v754
    %v756 = vrot.slane %v742, %v755
    %v757 = vcombine.low %v733, %v749
    %v758 = vcombine.high %v733, %v749
    %v759 = vcombine.low %v740, %v756
    %v760 = vcombine.high %v740, %v756
    %761 = vrot.lane.b32.xlu0 %v165, 64
    %v762 = vpop.permute.xlu0 %761
    %763 = vrot.lane.b32.xlu0 %v170, 64
    %v764 = vpop.permute.xlu0 %763
    %765 = vrot.lane.b32.xlu0 %v176, 64
    %v766 = vpop.permute.xlu0 %765
    %767 = vrot.lane.b32.xlu0 %v178, 64
    %v768 = vpop.permute.xlu0 %767
    %769 = vrot.lane.b32.xlu0 %v182, 64
    %v770 = vpop.permute.xlu0 %769
    %771 = vrot.lane.b32.xlu0 %v184, 64
    %v772 = vpop.permute.xlu0 %771
    %773 = vrot.lane.b32.xlu0 %v188, 64
    %v774 = vpop.permute.xlu0 %773
    %775 = vrot.lane.b32.xlu0 %v190, 64
    %v776 = vpop.permute.xlu0 %775
    %v785 = vcombine.low %v762, %v770
    %v786 = vcombine.high %v762, %v770
    %v788 = vunpack.c.l.s4 1983009808
    %v789 = vunpack.c.0.s8 %v788
    %v790 = vlaneseq
    %v791 = vshrl.u32 %v790, 7
    %v792 = vsub.s32 %v789, %v791
    %v793 = vrot.slane %v785, %v792
    %v795 = vunpack.c.l.s4 1983009808
    %v796 = vunpack.c.0.s8 %v795
    %v797 = vlaneseq
    %v798 = vshrl.u32 %v797, 7
    %v799 = vsub.s32 %v796, %v798
    %v800 = vrot.slane %v786, %v799
    %v801 = vcombine.low %v766, %v774
    %v802 = vcombine.high %v766, %v774
    %v804 = vunpack.c.l.s4 1983009808
    %v805 = vunpack.c.0.s8 %v804
    %v806 = vlaneseq
    %v807 = vshrl.u32 %v806, 7
    %v808 = vsub.s32 %v805, %v807
    %v809 = vrot.slane %v801, %v808
    %v811 = vunpack.c.l.s4 1983009808
    %v812 = vunpack.c.0.s8 %v811
    %v813 = vlaneseq
    %v814 = vshrl.u32 %v813, 7
    %v815 = vsub.s32 %v812, %v814
    %v816 = vrot.slane %v802, %v815
    %v817 = vcombine.low %v793, %v809
    %v818 = vcombine.high %v793, %v809
    %v820 = vunpack.c.l.s4 1934713408
    %v821 = vunpack.c.0.s8 %v820
    %v822 = vlaneseq
    %v823 = vshrl.u32 %v822, 7
    %v824 = vsub.s32 %v821, %v823
    %v825 = vrot.slane %v817, %v824
    %v827 = vunpack.c.l.s4 1934713408
    %v828 = vunpack.c.0.s8 %v827
    %v829 = vlaneseq
    %v830 = vshrl.u32 %v829, 7
    %v831 = vsub.s32 %v828, %v830
    %v832 = vrot.slane %v818, %v831
    %v833 = vcombine.low %v800, %v816
    %v834 = vcombine.high %v800, %v816
    %v836 = vunpack.c.l.s4 1934713408
    %v837 = vunpack.c.0.s8 %v836
    %v838 = vlaneseq
    %v839 = vshrl.u32 %v838, 7
    %v840 = vsub.s32 %v837, %v839
    %v841 = vrot.slane %v833, %v840
    %v843 = vunpack.c.l.s4 1934713408
    %v844 = vunpack.c.0.s8 %v843
    %v845 = vlaneseq
    %v846 = vshrl.u32 %v845, 7
    %v847 = vsub.s32 %v844, %v846
    %v848 = vrot.slane %v834, %v847
    %v849 = vcombine.high %v825, 0.0
    %v850 = vcombine.high %v832, 0.0
    %v851 = vcombine.high %v841, 0.0
    %v852 = vcombine.high %v848, 0.0
    %v853 = vcombine.low %v764, %v772
    %v854 = vcombine.high %v764, %v772
    %v856 = vunpack.c.l.s4 1983009808
    %v857 = vunpack.c.0.s8 %v856
    %v858 = vlaneseq
    %v859 = vshrl.u32 %v858, 7
    %v860 = vsub.s32 %v857, %v859
    %v861 = vrot.slane %v853, %v860
    %v863 = vunpack.c.l.s4 1983009808
    %v864 = vunpack.c.0.s8 %v863
    %v865 = vlaneseq
    %v866 = vshrl.u32 %v865, 7
    %v867 = vsub.s32 %v864, %v866
    %v868 = vrot.slane %v854, %v867
    %v869 = vcombine.low %v768, %v776
    %v870 = vcombine.high %v768, %v776
    %v872 = vunpack.c.l.s4 1983009808
    %v873 = vunpack.c.0.s8 %v872
    %v874 = vlaneseq
    %v875 = vshrl.u32 %v874, 7
    %v876 = vsub.s32 %v873, %v875
    %v877 = vrot.slane %v869, %v876
    %v879 = vunpack.c.l.s4 1983009808
    %v880 = vunpack.c.0.s8 %v879
    %v881 = vlaneseq
    %v882 = vshrl.u32 %v881, 7
    %v883 = vsub.s32 %v880, %v882
    %v884 = vrot.slane %v870, %v883
    %v885 = vcombine.low %v861, %v877
    %v886 = vcombine.high %v861, %v877
    %v888 = vunpack.c.l.s4 1934713408
    %v889 = vunpack.c.0.s8 %v888
    %v890 = vlaneseq
    %v891 = vshrl.u32 %v890, 7
    %v892 = vsub.s32 %v889, %v891
    %v893 = vrot.slane %v885, %v892
    %v895 = vunpack.c.l.s4 1934713408
    %v896 = vunpack.c.0.s8 %v895
    %v897 = vlaneseq
    %v898 = vshrl.u32 %v897, 7
    %v899 = vsub.s32 %v896, %v898
    %v900 = vrot.slane %v886, %v899
    %v901 = vcombine.low %v868, %v884
    %v902 = vcombine.high %v868, %v884
    %v904 = vunpack.c.l.s4 1934713408
    %v905 = vunpack.c.0.s8 %v904
    %v906 = vlaneseq
    %v907 = vshrl.u32 %v906, 7
    %v908 = vsub.s32 %v905, %v907
    %v909 = vrot.slane %v901, %v908
    %v911 = vunpack.c.l.s4 1934713408
    %v912 = vunpack.c.0.s8 %v911
    %v913 = vlaneseq
    %v914 = vshrl.u32 %v913, 7
    %v915 = vsub.s32 %v912, %v914
    %v916 = vrot.slane %v902, %v915
    %v917 = vcombine.high %v893, 0.0
    %v918 = vcombine.high %v900, 0.0
    %v919 = vcombine.high %v909, 0.0
    %v920 = vcombine.high %v916, 0.0
    %v921 = vcombine.low %v825, %v832
    %v923 = vunpack.c.l.s4 1983009808
    %v924 = vunpack.c.0.s8 %v923
    %v925 = vlaneseq
    %v926 = vshrl.u32 %v925, 7
    %v927 = vsub.s32 %v924, %v926
    %v928 = vrot.slane %v921, %v927
    %v929 = vcombine.low %v849, %v850
    %v931 = vunpack.c.l.s4 1983009808
    %v932 = vunpack.c.0.s8 %v931
    %v933 = vlaneseq
    %v934 = vshrl.u32 %v933, 7
    %v935 = vsub.s32 %v932, %v934
    %v936 = vrot.slane %v929, %v935
    %v937 = vcombine.low %v841, %v848
    %v939 = vunpack.c.l.s4 1983009808
    %v940 = vunpack.c.0.s8 %v939
    %v941 = vlaneseq
    %v942 = vshrl.u32 %v941, 7
    %v943 = vsub.s32 %v940, %v942
    %v944 = vrot.slane %v937, %v943
    %v945 = vcombine.low %v851, %v852
    %v947 = vunpack.c.l.s4 1983009808
    %v948 = vunpack.c.0.s8 %v947
    %v949 = vlaneseq
    %v950 = vshrl.u32 %v949, 7
    %v951 = vsub.s32 %v948, %v950
    %v952 = vrot.slane %v945, %v951
    %v953 = vcombine.low %v928, %v936
    %v954 = vcombine.high %v928, %v936
    %v956 = vunpack.c.l.s4 1934713408
    %v957 = vunpack.c.0.s8 %v956
    %v958 = vlaneseq
    %v959 = vshrl.u32 %v958, 7
    %v960 = vsub.s32 %v957, %v959
    %v961 = vrot.slane %v953, %v960
    %v963 = vunpack.c.l.s4 1934713408
    %v964 = vunpack.c.0.s8 %v963
    %v965 = vlaneseq
    %v966 = vshrl.u32 %v965, 7
    %v967 = vsub.s32 %v964, %v966
    %v968 = vrot.slane %v954, %v967
    %v969 = vcombine.low %v944, %v952
    %v970 = vcombine.high %v944, %v952
    %v972 = vunpack.c.l.s4 1934713408
    %v973 = vunpack.c.0.s8 %v972
    %v974 = vlaneseq
    %v975 = vshrl.u32 %v974, 7
    %v976 = vsub.s32 %v973, %v975
    %v977 = vrot.slane %v969, %v976
    %v979 = vunpack.c.l.s4 1934713408
    %v980 = vunpack.c.0.s8 %v979
    %v981 = vlaneseq
    %v982 = vshrl.u32 %v981, 7
    %v983 = vsub.s32 %v980, %v982
    %v984 = vrot.slane %v970, %v983
    %v985 = vcombine.low %v961, %v977
    %v986 = vcombine.high %v961, %v977
    %v987 = vcombine.low %v968, %v984
    %v988 = vcombine.high %v968, %v984
    %v989 = vcombine.low %v893, %v900
    %v991 = vunpack.c.l.s4 1983009808
    %v992 = vunpack.c.0.s8 %v991
    %v993 = vlaneseq
    %v994 = vshrl.u32 %v993, 7
    %v995 = vsub.s32 %v992, %v994
    %v996 = vrot.slane %v989, %v995
    %v997 = vcombine.low %v917, %v918
    %v999 = vunpack.c.l.s4 1983009808
    %v1000 = vunpack.c.0.s8 %v999
    %v1001 = vlaneseq
    %v1002 = vshrl.u32 %v1001, 7
    %v1003 = vsub.s32 %v1000, %v1002
    %v1004 = vrot.slane %v997, %v1003
    %v1005 = vcombine.low %v909, %v916
    %v1007 = vunpack.c.l.s4 1983009808
    %v1008 = vunpack.c.0.s8 %v1007
    %v1009 = vlaneseq
    %v1010 = vshrl.u32 %v1009, 7
    %v1011 = vsub.s32 %v1008, %v1010
    %v1012 = vrot.slane %v1005, %v1011
    %v1013 = vcombine.low %v919, %v920
    %v1015 = vunpack.c.l.s4 1983009808
    %v1016 = vunpack.c.0.s8 %v1015
    %v1017 = vlaneseq
    %v1018 = vshrl.u32 %v1017, 7
    %v1019 = vsub.s32 %v1016, %v1018
    %v1020 = vrot.slane %v1013, %v1019
    %v1021 = vcombine.low %v996, %v1004
    %v1022 = vcombine.high %v996, %v1004
    %v1024 = vunpack.c.l.s4 1934713408
    %v1025 = vunpack.c.0.s8 %v1024
    %v1026 = vlaneseq
    %v1027 = vshrl.u32 %v1026, 7
    %v1028 = vsub.s32 %v1025, %v1027
    %v1029 = vrot.slane %v1021, %v1028
    %v1031 = vunpack.c.l.s4 1934713408
    %v1032 = vunpack.c.0.s8 %v1031
    %v1033 = vlaneseq
    %v1034 = vshrl.u32 %v1033, 7
    %v1035 = vsub.s32 %v1032, %v1034
    %v1036 = vrot.slane %v1022, %v1035
    %v1037 = vcombine.low %v1012, %v1020
    %v1038 = vcombine.high %v1012, %v1020
    %v1040 = vunpack.c.l.s4 1934713408
    %v1041 = vunpack.c.0.s8 %v1040
    %v1042 = vlaneseq
    %v1043 = vshrl.u32 %v1042, 7
    %v1044 = vsub.s32 %v1041, %v1043
    %v1045 = vrot.slane %v1037, %v1044
    %v1047 = vunpack.c.l.s4 1934713408
    %v1048 = vunpack.c.0.s8 %v1047
    %v1049 = vlaneseq
    %v1050 = vshrl.u32 %v1049, 7
    %v1051 = vsub.s32 %v1048, %v1050
    %v1052 = vrot.slane %v1038, %v1051
    %v1053 = vcombine.low %v1029, %v1045
    %v1054 = vcombine.high %v1029, %v1045
    %v1055 = vcombine.low %v1036, %v1052
    %v1056 = vcombine.high %v1036, %v1052
    %vm1057 = vcmask 64512
    %v1059 = vsel %vm1057, %v393, 0
    %v1062 = vsel %vm1057, %v689, 0
    %1064 = vmatprep.subr.mxu0 0.0
    %1065 = vmatpush1.xpose.msra.mxu0 %v1062
    %1066 = vmatprep.subr.mxu0 0.0
    %1067 = vmatpush1.xpose.msra.mxu0 0.0
    %1068 = vmatprep.subr.mxu0 0.0
    %1069 = vmatpush1.xpose.msra.mxu0 0.0
    %1070 = vmatprep.subr.mxu0 0.0
    %1071 = vmatpush1.xpose.msra.mxu0 0.0
    %1072 = vmatprep.subr.mxu0 0.0
    %1073 = vmatpush1.xpose.msra.mxu0 0.0
    %1074 = vmatprep.subr.mxu0 0.0
    %1075 = vmatpush1.xpose.msra.mxu0 0.0
    %1076 = vmatprep.subr.mxu0 0.0
    %1077 = vmatpush1.xpose.msra.mxu0 0.0
    %1078 = vmatprep.subr.mxu0 0.0
    %1079 = vmatpush1.xpose.msra.mxu0 0.0
    %1080 = vmatprep.subr.mxu0 0.0
    %1081 = vmatpush1.xpose.msra.mxu0 0.0
    %1082 = vmatprep.subr.mxu0 0.0
    %1083 = vmatpush1.xpose.msra.mxu0 0.0
    %1084 = vmatprep.subr.mxu0 0.0
    %1085 = vmatpush1.xpose.msra.mxu0 0.0
    %1086 = vmatprep.subr.mxu0 0.0
    %1087 = vmatpush1.xpose.msra.mxu0 0.0
    %1088 = vmatprep.subr.mxu0 0.0
    %1089 = vmatpush1.xpose.msra.mxu0 0.0
    %1090 = vmatprep.subr.mxu0 0.0
    %1091 = vmatpush1.xpose.msra.mxu0 0.0
    %1092 = vmatprep.subr.mxu0 0.0
    %1093 = vmatpush1.xpose.msra.mxu0 0.0
    %1094 = vmatprep.subr.mxu0 0.0
    %1095 = vmatpush1.xpose.msra.mxu0 0.0
    %1096 = vmatprep.subr.mxu0 0.0
    %1097 = vmatpush1.xpose.msra.mxu0 0.0
    %1098 = vmatprep.subr.mxu0 0.0
    %1099 = vmatpush1.xpose.msra.mxu0 0.0
    %1100 = vmatprep.subr.mxu0 0.0
    %1101 = vmatpush1.xpose.msra.mxu0 0.0
    %1102 = vmatprep.subr.mxu0 0.0
    %1103 = vmatpush1.xpose.msra.mxu0 0.0
    %1104 = vmatprep.subr.mxu0 0.0
    %1105 = vmatpush1.xpose.msra.mxu0 0.0
    %1106 = vmatprep.subr.mxu0 0.0
    %1107 = vmatpush1.xpose.msra.mxu0 0.0
    %1108 = vmatprep.subr.mxu0 0.0
    %1109 = vmatpush1.xpose.msra.mxu0 0.0
    %1110 = vmatprep.subr.mxu0 0.0
    %1111 = vmatpush1.xpose.msra.mxu0 0.0
    %1112 = vmatprep.subr.mxu0 0.0
    %1113 = vmatpush1.xpose.msra.mxu0 0.0
    %1114 = vmatprep.subr.mxu0 0.0
    %1115 = vmatpush1.xpose.msra.mxu0 0.0
    %1116 = vmatprep.subr.mxu0 0.0
    %1117 = vmatpush1.xpose.msra.mxu0 0.0
    %1118 = vmatprep.subr.mxu0 0.0
    %1119 = vmatpush1.xpose.msra.mxu0 0.0
    %1120 = vmatprep.subr.mxu0 0.0
    %1121 = vmatpush1.xpose.msra.mxu0 0.0
    %1122 = vmatprep.subr.mxu0 0.0
    %1123 = vmatpush1.xpose.msra.mxu0 0.0
    %1124 = vmatprep.subr.mxu0 0.0
    %1125 = vmatpush1.xpose.msra.mxu0 0.0
    %1126 = vmatprep.subr.mxu0 0.0
    %1127 = vmatpush1.xpose.msra.mxu0 0.0
    %1128 = vmatprep.mubr.f32.mxu0 0.0
    %1129 = vmatmul.mubr.f32.gmra.mrb[0].mxu0 %v1059
    %v1130 = vpop.f32.mrb[0].mxu0
    %v1131 = vadd.f32 0.0, %v1130
    %v1132 = vpop.f32.mrb[0].mxu0
    %1133 = vdwg.mxu0
    %v1135 = vsel %vm1057, %v394, 0
    %v1138 = vsel %vm1057, %v690, 0
    %1140 = vmatprep.subr.mxu0 0.0
    %1141 = vmatpush1.xpose.msra.mxu0 %v1138
    %1142 = vmatprep.subr.mxu0 0.0
    %1143 = vmatpush1.xpose.msra.mxu0 0.0
    %1144 = vmatprep.subr.mxu0 0.0
    %1145 = vmatpush1.xpose.msra.mxu0 0.0
    %1146 = vmatprep.subr.mxu0 0.0
    %1147 = vmatpush1.xpose.msra.mxu0 0.0
    %1148 = vmatprep.subr.mxu0 0.0
    %1149 = vmatpush1.xpose.msra.mxu0 0.0
    %1150 = vmatprep.subr.mxu0 0.0
    %1151 = vmatpush1.xpose.msra.mxu0 0.0
    %1152 = vmatprep.subr.mxu0 0.0
    %1153 = vmatpush1.xpose.msra.mxu0 0.0
    %1154 = vmatprep.subr.mxu0 0.0
    %1155 = vmatpush1.xpose.msra.mxu0 0.0
    %1156 = vmatprep.subr.mxu0 0.0
    %1157 = vmatpush1.xpose.msra.mxu0 0.0
    %1158 = vmatprep.subr.mxu0 0.0
    %1159 = vmatpush1.xpose.msra.mxu0 0.0
    %1160 = vmatprep.subr.mxu0 0.0
    %1161 = vmatpush1.xpose.msra.mxu0 0.0
    %1162 = vmatprep.subr.mxu0 0.0
    %1163 = vmatpush1.xpose.msra.mxu0 0.0
    %1164 = vmatprep.subr.mxu0 0.0
    %1165 = vmatpush1.xpose.msra.mxu0 0.0
    %1166 = vmatprep.subr.mxu0 0.0
    %1167 = vmatpush1.xpose.msra.mxu0 0.0
    %1168 = vmatprep.subr.mxu0 0.0
    %1169 = vmatpush1.xpose.msra.mxu0 0.0
    %1170 = vmatprep.subr.mxu0 0.0
    %1171 = vmatpush1.xpose.msra.mxu0 0.0
    %1172 = vmatprep.subr.mxu0 0.0
    %1173 = vmatpush1.xpose.msra.mxu0 0.0
    %1174 = vmatprep.subr.mxu0 0.0
    %1175 = vmatpush1.xpose.msra.mxu0 0.0
    %1176 = vmatprep.subr.mxu0 0.0
    %1177 = vmatpush1.xpose.msra.mxu0 0.0
    %1178 = vmatprep.subr.mxu0 0.0
    %1179 = vmatpush1.xpose.msra.mxu0 0.0
    %1180 = vmatprep.subr.mxu0 0.0
    %1181 = vmatpush1.xpose.msra.mxu0 0.0
    %1182 = vmatprep.subr.mxu0 0.0
    %1183 = vmatpush1.xpose.msra.mxu0 0.0
    %1184 = vmatprep.subr.mxu0 0.0
    %1185 = vmatpush1.xpose.msra.mxu0 0.0
    %1186 = vmatprep.subr.mxu0 0.0
    %1187 = vmatpush1.xpose.msra.mxu0 0.0
    %1188 = vmatprep.subr.mxu0 0.0
    %1189 = vmatpush1.xpose.msra.mxu0 0.0
    %1190 = vmatprep.subr.mxu0 0.0
    %1191 = vmatpush1.xpose.msra.mxu0 0.0
    %1192 = vmatprep.subr.mxu0 0.0
    %1193 = vmatpush1.xpose.msra.mxu0 0.0
    %1194 = vmatprep.subr.mxu0 0.0
    %1195 = vmatpush1.xpose.msra.mxu0 0.0
    %1196 = vmatprep.subr.mxu0 0.0
    %1197 = vmatpush1.xpose.msra.mxu0 0.0
    %1198 = vmatprep.subr.mxu0 0.0
    %1199 = vmatpush1.xpose.msra.mxu0 0.0
    %1200 = vmatprep.subr.mxu0 0.0
    %1201 = vmatpush1.xpose.msra.mxu0 0.0
    %1202 = vmatprep.subr.mxu0 0.0
    %1203 = vmatpush1.xpose.msra.mxu0 0.0
    %1204 = vmatprep.mubr.f32.mxu0 0.0
    %1205 = vmatmul.mubr.f32.gmra.mrb[0].mxu0 %v1135
    %v1206 = vpop.f32.mrb[0].mxu0
    %v1207 = vadd.f32 0.0, %v1206
    %v1208 = vpop.f32.mrb[0].mxu0
    %1209 = vdwg.mxu0
    %v1211 = vsel %vm1057, %v395, 0
    %v1214 = vsel %vm1057, %v691, 0
    %1216 = vmatprep.subr.mxu0 0.0
    %1217 = vmatpush1.xpose.msra.mxu0 %v1214
    %1218 = vmatprep.subr.mxu0 0.0
    %1219 = vmatpush1.xpose.msra.mxu0 0.0
    %1220 = vmatprep.subr.mxu0 0.0
    %1221 = vmatpush1.xpose.msra.mxu0 0.0
    %1222 = vmatprep.subr.mxu0 0.0
    %1223 = vmatpush1.xpose.msra.mxu0 0.0
    %1224 = vmatprep.subr.mxu0 0.0
    %1225 = vmatpush1.xpose.msra.mxu0 0.0
    %1226 = vmatprep.subr.mxu0 0.0
    %1227 = vmatpush1.xpose.msra.mxu0 0.0
    %1228 = vmatprep.subr.mxu0 0.0
    %1229 = vmatpush1.xpose.msra.mxu0 0.0
    %1230 = vmatprep.subr.mxu0 0.0
    %1231 = vmatpush1.xpose.msra.mxu0 0.0
    %1232 = vmatprep.subr.mxu0 0.0
    %1233 = vmatpush1.xpose.msra.mxu0 0.0
    %1234 = vmatprep.subr.mxu0 0.0
    %1235 = vmatpush1.xpose.msra.mxu0 0.0
    %1236 = vmatprep.subr.mxu0 0.0
    %1237 = vmatpush1.xpose.msra.mxu0 0.0
    %1238 = vmatprep.subr.mxu0 0.0
    %1239 = vmatpush1.xpose.msra.mxu0 0.0
    %1240 = vmatprep.subr.mxu0 0.0
    %1241 = vmatpush1.xpose.msra.mxu0 0.0
    %1242 = vmatprep.subr.mxu0 0.0
    %1243 = vmatpush1.xpose.msra.mxu0 0.0
    %1244 = vmatprep.subr.mxu0 0.0
    %1245 = vmatpush1.xpose.msra.mxu0 0.0
    %1246 = vmatprep.subr.mxu0 0.0
    %1247 = vmatpush1.xpose.msra.mxu0 0.0
    %1248 = vmatprep.subr.mxu0 0.0
    %1249 = vmatpush1.xpose.msra.mxu0 0.0
    %1250 = vmatprep.subr.mxu0 0.0
    %1251 = vmatpush1.xpose.msra.mxu0 0.0
    %1252 = vmatprep.subr.mxu0 0.0
    %1253 = vmatpush1.xpose.msra.mxu0 0.0
    %1254 = vmatprep.subr.mxu0 0.0
    %1255 = vmatpush1.xpose.msra.mxu0 0.0
    %1256 = vmatprep.subr.mxu0 0.0
    %1257 = vmatpush1.xpose.msra.mxu0 0.0
    %1258 = vmatprep.subr.mxu0 0.0
    %1259 = vmatpush1.xpose.msra.mxu0 0.0
    %1260 = vmatprep.subr.mxu0 0.0
    %1261 = vmatpush1.xpose.msra.mxu0 0.0
    %1262 = vmatprep.subr.mxu0 0.0
    %1263 = vmatpush1.xpose.msra.mxu0 0.0
    %1264 = vmatprep.subr.mxu0 0.0
    %1265 = vmatpush1.xpose.msra.mxu0 0.0
    %1266 = vmatprep.subr.mxu0 0.0
    %1267 = vmatpush1.xpose.msra.mxu0 0.0
    %1268 = vmatprep.subr.mxu0 0.0
    %1269 = vmatpush1.xpose.msra.mxu0 0.0
    %1270 = vmatprep.subr.mxu0 0.0
    %1271 = vmatpush1.xpose.msra.mxu0 0.0
    %1272 = vmatprep.subr.mxu0 0.0
    %1273 = vmatpush1.xpose.msra.mxu0 0.0
    %1274 = vmatprep.subr.mxu0 0.0
    %1275 = vmatpush1.xpose.msra.mxu0 0.0
    %1276 = vmatprep.subr.mxu0 0.0
    %1277 = vmatpush1.xpose.msra.mxu0 0.0
    %1278 = vmatprep.subr.mxu0 0.0
    %1279 = vmatpush1.xpose.msra.mxu0 0.0
    %1280 = vmatprep.mubr.f32.mxu0 0.0
    %1281 = vmatmul.mubr.f32.gmra.mrb[0].mxu0 %v1211
    %v1282 = vpop.f32.mrb[0].mxu0
    %v1283 = vadd.f32 0.0, %v1282
    %v1284 = vpop.f32.mrb[0].mxu0
    %1285 = vdwg.mxu0
    %v1287 = vsel %vm1057, %v396, 0
    %v1290 = vsel %vm1057, %v692, 0
    %1292 = vmatprep.subr.mxu0 0.0
    %1293 = vmatpush1.xpose.msra.mxu0 %v1290
    %1294 = vmatprep.subr.mxu0 0.0
    %1295 = vmatpush1.xpose.msra.mxu0 0.0
    %1296 = vmatprep.subr.mxu0 0.0
    %1297 = vmatpush1.xpose.msra.mxu0 0.0
    %1298 = vmatprep.subr.mxu0 0.0
    %1299 = vmatpush1.xpose.msra.mxu0 0.0
    %1300 = vmatprep.subr.mxu0 0.0
    %1301 = vmatpush1.xpose.msra.mxu0 0.0
    %1302 = vmatprep.subr.mxu0 0.0
    %1303 = vmatpush1.xpose.msra.mxu0 0.0
    %1304 = vmatprep.subr.mxu0 0.0
    %1305 = vmatpush1.xpose.msra.mxu0 0.0
    %1306 = vmatprep.subr.mxu0 0.0
    %1307 = vmatpush1.xpose.msra.mxu0 0.0
    %1308 = vmatprep.subr.mxu0 0.0
    %1309 = vmatpush1.xpose.msra.mxu0 0.0
    %1310 = vmatprep.subr.mxu0 0.0
    %1311 = vmatpush1.xpose.msra.mxu0 0.0
    %1312 = vmatprep.subr.mxu0 0.0
    %1313 = vmatpush1.xpose.msra.mxu0 0.0
    %1314 = vmatprep.subr.mxu0 0.0
    %1315 = vmatpush1.xpose.msra.mxu0 0.0
    %1316 = vmatprep.subr.mxu0 0.0
    %1317 = vmatpush1.xpose.msra.mxu0 0.0
    %1318 = vmatprep.subr.mxu0 0.0
    %1319 = vmatpush1.xpose.msra.mxu0 0.0
    %1320 = vmatprep.subr.mxu0 0.0
    %1321 = vmatpush1.xpose.msra.mxu0 0.0
    %1322 = vmatprep.subr.mxu0 0.0
    %1323 = vmatpush1.xpose.msra.mxu0 0.0
    %1324 = vmatprep.subr.mxu0 0.0
    %1325 = vmatpush1.xpose.msra.mxu0 0.0
    %1326 = vmatprep.subr.mxu0 0.0
    %1327 = vmatpush1.xpose.msra.mxu0 0.0
    %1328 = vmatprep.subr.mxu0 0.0
    %1329 = vmatpush1.xpose.msra.mxu0 0.0
    %1330 = vmatprep.subr.mxu0 0.0
    %1331 = vmatpush1.xpose.msra.mxu0 0.0
    %1332 = vmatprep.subr.mxu0 0.0
    %1333 = vmatpush1.xpose.msra.mxu0 0.0
    %1334 = vmatprep.subr.mxu0 0.0
    %1335 = vmatpush1.xpose.msra.mxu0 0.0
    %1336 = vmatprep.subr.mxu0 0.0
    %1337 = vmatpush1.xpose.msra.mxu0 0.0
    %1338 = vmatprep.subr.mxu0 0.0
    %1339 = vmatpush1.xpose.msra.mxu0 0.0
    %1340 = vmatprep.subr.mxu0 0.0
    %1341 = vmatpush1.xpose.msra.mxu0 0.0
    %1342 = vmatprep.subr.mxu0 0.0
    %1343 = vmatpush1.xpose.msra.mxu0 0.0
    %1344 = vmatprep.subr.mxu0 0.0
    %1345 = vmatpush1.xpose.msra.mxu0 0.0
    %1346 = vmatprep.subr.mxu0 0.0
    %1347 = vmatpush1.xpose.msra.mxu0 0.0
    %1348 = vmatprep.subr.mxu0 0.0
    %1349 = vmatpush1.xpose.msra.mxu0 0.0
    %1350 = vmatprep.subr.mxu0 0.0
    %1351 = vmatpush1.xpose.msra.mxu0 0.0
    %1352 = vmatprep.subr.mxu0 0.0
    %1353 = vmatpush1.xpose.msra.mxu0 0.0
    %1354 = vmatprep.subr.mxu0 0.0
    %1355 = vmatpush1.xpose.msra.mxu0 0.0
    %1356 = vmatprep.mubr.f32.mxu0 0.0
    %1357 = vmatmul.mubr.f32.gmra.mrb[0].mxu0 %v1287
    %v1358 = vpop.f32.mrb[0].mxu0
    %v1359 = vadd.f32 0.0, %v1358
    %v1360 = vpop.f32.mrb[0].mxu0
    %1361 = vdwg.mxu0
    %v1363 = vsel %vm1057, %v461, 0
    %v1366 = vsel %vm1057, %v757, 0
    %1368 = vmatprep.subr.mxu0 0.0
    %1369 = vmatpush1.xpose.msra.mxu0 %v1366
    %1370 = vmatprep.subr.mxu0 0.0
    %1371 = vmatpush1.xpose.msra.mxu0 0.0
    %1372 = vmatprep.subr.mxu0 0.0
    %1373 = vmatpush1.xpose.msra.mxu0 0.0
    %1374 = vmatprep.subr.mxu0 0.0
    %1375 = vmatpush1.xpose.msra.mxu0 0.0
    %1376 = vmatprep.subr.mxu0 0.0
    %1377 = vmatpush1.xpose.msra.mxu0 0.0
    %1378 = vmatprep.subr.mxu0 0.0
    %1379 = vmatpush1.xpose.msra.mxu0 0.0
    %1380 = vmatprep.subr.mxu0 0.0
    %1381 = vmatpush1.xpose.msra.mxu0 0.0
    %1382 = vmatprep.subr.mxu0 0.0
    %1383 = vmatpush1.xpose.msra.mxu0 0.0
    %1384 = vmatprep.subr.mxu0 0.0
    %1385 = vmatpush1.xpose.msra.mxu0 0.0
    %1386 = vmatprep.subr.mxu0 0.0
    %1387 = vmatpush1.xpose.msra.mxu0 0.0
    %1388 = vmatprep.subr.mxu0 0.0
    %1389 = vmatpush1.xpose.msra.mxu0 0.0
    %1390 = vmatprep.subr.mxu0 0.0
    %1391 = vmatpush1.xpose.msra.mxu0 0.0
    %1392 = vmatprep.subr.mxu0 0.0
    %1393 = vmatpush1.xpose.msra.mxu0 0.0
    %1394 = vmatprep.subr.mxu0 0.0
    %1395 = vmatpush1.xpose.msra.mxu0 0.0
    %1396 = vmatprep.subr.mxu0 0.0
    %1397 = vmatpush1.xpose.msra.mxu0 0.0
    %1398 = vmatprep.subr.mxu0 0.0
    %1399 = vmatpush1.xpose.msra.mxu0 0.0
    %1400 = vmatprep.subr.mxu0 0.0
    %1401 = vmatpush1.xpose.msra.mxu0 0.0
    %1402 = vmatprep.subr.mxu0 0.0
    %1403 = vmatpush1.xpose.msra.mxu0 0.0
    %1404 = vmatprep.subr.mxu0 0.0
    %1405 = vmatpush1.xpose.msra.mxu0 0.0
    %1406 = vmatprep.subr.mxu0 0.0
    %1407 = vmatpush1.xpose.msra.mxu0 0.0
    %1408 = vmatprep.subr.mxu0 0.0
    %1409 = vmatpush1.xpose.msra.mxu0 0.0
    %1410 = vmatprep.subr.mxu0 0.0
    %1411 = vmatpush1.xpose.msra.mxu0 0.0
    %1412 = vmatprep.subr.mxu0 0.0
    %1413 = vmatpush1.xpose.msra.mxu0 0.0
    %1414 = vmatprep.subr.mxu0 0.0
    %1415 = vmatpush1.xpose.msra.mxu0 0.0
    %1416 = vmatprep.subr.mxu0 0.0
    %1417 = vmatpush1.xpose.msra.mxu0 0.0
    %1418 = vmatprep.subr.mxu0 0.0
    %1419 = vmatpush1.xpose.msra.mxu0 0.0
    %1420 = vmatprep.subr.mxu0 0.0
    %1421 = vmatpush1.xpose.msra.mxu0 0.0
    %1422 = vmatprep.subr.mxu0 0.0
    %1423 = vmatpush1.xpose.msra.mxu0 0.0
    %1424 = vmatprep.subr.mxu0 0.0
    %1425 = vmatpush1.xpose.msra.mxu0 0.0
    %1426 = vmatprep.subr.mxu0 0.0
    %1427 = vmatpush1.xpose.msra.mxu0 0.0
    %1428 = vmatprep.subr.mxu0 0.0
    %1429 = vmatpush1.xpose.msra.mxu0 0.0
    %1430 = vmatprep.subr.mxu0 0.0
    %1431 = vmatpush1.xpose.msra.mxu0 0.0
    %1432 = vmatprep.mubr.f32.mxu0 0.0
    %1433 = vmatmul.mubr.f32.gmra.mrb[0].mxu0 %v1363
    %v1434 = vpop.f32.mrb[0].mxu0
    %v1435 = vadd.f32 0.0, %v1434
    %v1436 = vpop.f32.mrb[0].mxu0
    %1437 = vdwg.mxu0
    %v1439 = vsel %vm1057, %v462, 0
    %v1442 = vsel %vm1057, %v758, 0
    %1444 = vmatprep.subr.mxu0 0.0
    %1445 = vmatpush1.xpose.msra.mxu0 %v1442
    %1446 = vmatprep.subr.mxu0 0.0
    %1447 = vmatpush1.xpose.msra.mxu0 0.0
    %1448 = vmatprep.subr.mxu0 0.0
    %1449 = vmatpush1.xpose.msra.mxu0 0.0
    %1450 = vmatprep.subr.mxu0 0.0
    %1451 = vmatpush1.xpose.msra.mxu0 0.0
    %1452 = vmatprep.subr.mxu0 0.0
    %1453 = vmatpush1.xpose.msra.mxu0 0.0
    %1454 = vmatprep.subr.mxu0 0.0
    %1455 = vmatpush1.xpose.msra.mxu0 0.0
    %1456 = vmatprep.subr.mxu0 0.0
    %1457 = vmatpush1.xpose.msra.mxu0 0.0
    %1458 = vmatprep.subr.mxu0 0.0
    %1459 = vmatpush1.xpose.msra.mxu0 0.0
    %1460 = vmatprep.subr.mxu0 0.0
    %1461 = vmatpush1.xpose.msra.mxu0 0.0
    %1462 = vmatprep.subr.mxu0 0.0
    %1463 = vmatpush1.xpose.msra.mxu0 0.0
    %1464 = vmatprep.subr.mxu0 0.0
    %1465 = vmatpush1.xpose.msra.mxu0 0.0
    %1466 = vmatprep.subr.mxu0 0.0
    %1467 = vmatpush1.xpose.msra.mxu0 0.0
    %1468 = vmatprep.subr.mxu0 0.0
    %1469 = vmatpush1.xpose.msra.mxu0 0.0
    %1470 = vmatprep.subr.mxu0 0.0
    %1471 = vmatpush1.xpose.msra.mxu0 0.0
    %1472 = vmatprep.subr.mxu0 0.0
    %1473 = vmatpush1.xpose.msra.mxu0 0.0
    %1474 = vmatprep.subr.mxu0 0.0
    %1475 = vmatpush1.xpose.msra.mxu0 0.0
    %1476 = vmatprep.subr.mxu0 0.0
    %1477 = vmatpush1.xpose.msra.mxu0 0.0
    %1478 = vmatprep.subr.mxu0 0.0
    %1479 = vmatpush1.xpose.msra.mxu0 0.0
    %1480 = vmatprep.subr.mxu0 0.0
    %1481 = vmatpush1.xpose.msra.mxu0 0.0
    %1482 = vmatprep.subr.mxu0 0.0
    %1483 = vmatpush1.xpose.msra.mxu0 0.0
    %1484 = vmatprep.subr.mxu0 0.0
    %1485 = vmatpush1.xpose.msra.mxu0 0.0
    %1486 = vmatprep.subr.mxu0 0.0
    %1487 = vmatpush1.xpose.msra.mxu0 0.0
    %1488 = vmatprep.subr.mxu0 0.0
    %1489 = vmatpush1.xpose.msra.mxu0 0.0
    %1490 = vmatprep.subr.mxu0 0.0
    %1491 = vmatpush1.xpose.msra.mxu0 0.0
    %1492 = vmatprep.subr.mxu0 0.0
    %1493 = vmatpush1.xpose.msra.mxu0 0.0
    %1494 = vmatprep.subr.mxu0 0.0
    %1495 = vmatpush1.xpose.msra.mxu0 0.0
    %1496 = vmatprep.subr.mxu0 0.0
    %1497 = vmatpush1.xpose.msra.mxu0 0.0
    %1498 = vmatprep.subr.mxu0 0.0
    %1499 = vmatpush1.xpose.msra.mxu0 0.0
    %1500 = vmatprep.subr.mxu0 0.0
    %1501 = vmatpush1.xpose.msra.mxu0 0.0
    %1502 = vmatprep.subr.mxu0 0.0
    %1503 = vmatpush1.xpose.msra.mxu0 0.0
    %1504 = vmatprep.subr.mxu0 0.0
    %1505 = vmatpush1.xpose.msra.mxu0 0.0
    %1506 = vmatprep.subr.mxu0 0.0
    %1507 = vmatpush1.xpose.msra.mxu0 0.0
    %1508 = vmatprep.mubr.f32.mxu0 0.0
    %1509 = vmatmul.mubr.f32.gmra.mrb[0].mxu0 %v1439
    %v1510 = vpop.f32.mrb[0].mxu0
    %v1511 = vadd.f32 0.0, %v1510
    %v1512 = vpop.f32.mrb[0].mxu0
    %1513 = vdwg.mxu0
    %v1515 = vsel %vm1057, %v463, 0
    %v1518 = vsel %vm1057, %v759, 0
    %1520 = vmatprep.subr.mxu0 0.0
    %1521 = vmatpush1.xpose.msra.mxu0 %v1518
    %1522 = vmatprep.subr.mxu0 0.0
    %1523 = vmatpush1.xpose.msra.mxu0 0.0
    %1524 = vmatprep.subr.mxu0 0.0
    %1525 = vmatpush1.xpose.msra.mxu0 0.0
    %1526 = vmatprep.subr.mxu0 0.0
    %1527 = vmatpush1.xpose.msra.mxu0 0.0
    %1528 = vmatprep.subr.mxu0 0.0
    %1529 = vmatpush1.xpose.msra.mxu0 0.0
    %1530 = vmatprep.subr.mxu0 0.0
    %1531 = vmatpush1.xpose.msra.mxu0 0.0
    %1532 = vmatprep.subr.mxu0 0.0
    %1533 = vmatpush1.xpose.msra.mxu0 0.0
    %1534 = vmatprep.subr.mxu0 0.0
    %1535 = vmatpush1.xpose.msra.mxu0 0.0
    %1536 = vmatprep.subr.mxu0 0.0
    %1537 = vmatpush1.xpose.msra.mxu0 0.0
    %1538 = vmatprep.subr.mxu0 0.0
    %1539 = vmatpush1.xpose.msra.mxu0 0.0
    %1540 = vmatprep.subr.mxu0 0.0
    %1541 = vmatpush1.xpose.msra.mxu0 0.0
    %1542 = vmatprep.subr.mxu0 0.0
    %1543 = vmatpush1.xpose.msra.mxu0 0.0
    %1544 = vmatprep.subr.mxu0 0.0
    %1545 = vmatpush1.xpose.msra.mxu0 0.0
    %1546 = vmatprep.subr.mxu0 0.0
    %1547 = vmatpush1.xpose.msra.mxu0 0.0
    %1548 = vmatprep.subr.mxu0 0.0
    %1549 = vmatpush1.xpose.msra.mxu0 0.0
    %1550 = vmatprep.subr.mxu0 0.0
    %1551 = vmatpush1.xpose.msra.mxu0 0.0
    %1552 = vmatprep.subr.mxu0 0.0
    %1553 = vmatpush1.xpose.msra.mxu0 0.0
    %1554 = vmatprep.subr.mxu0 0.0
    %1555 = vmatpush1.xpose.msra.mxu0 0.0
    %1556 = vmatprep.subr.mxu0 0.0
    %1557 = vmatpush1.xpose.msra.mxu0 0.0
    %1558 = vmatprep.subr.mxu0 0.0
    %1559 = vmatpush1.xpose.msra.mxu0 0.0
    %1560 = vmatprep.subr.mxu0 0.0
    %1561 = vmatpush1.xpose.msra.mxu0 0.0
    %1562 = vmatprep.subr.mxu0 0.0
    %1563 = vmatpush1.xpose.msra.mxu0 0.0
    %1564 = vmatprep.subr.mxu0 0.0
    %1565 = vmatpush1.xpose.msra.mxu0 0.0
    %1566 = vmatprep.subr.mxu0 0.0
    %1567 = vmatpush1.xpose.msra.mxu0 0.0
    %1568 = vmatprep.subr.mxu0 0.0
    %1569 = vmatpush1.xpose.msra.mxu0 0.0
    %1570 = vmatprep.subr.mxu0 0.0
    %1571 = vmatpush1.xpose.msra.mxu0 0.0
    %1572 = vmatprep.subr.mxu0 0.0
    %1573 = vmatpush1.xpose.msra.mxu0 0.0
    %1574 = vmatprep.subr.mxu0 0.0
    %1575 = vmatpush1.xpose.msra.mxu0 0.0
    %1576 = vmatprep.subr.mxu0 0.0
    %1577 = vmatpush1.xpose.msra.mxu0 0.0
    %1578 = vmatprep.subr.mxu0 0.0
    %1579 = vmatpush1.xpose.msra.mxu0 0.0
    %1580 = vmatprep.subr.mxu0 0.0
    %1581 = vmatpush1.xpose.msra.mxu0 0.0
    %1582 = vmatprep.subr.mxu0 0.0
    %1583 = vmatpush1.xpose.msra.mxu0 0.0
    %1584 = vmatprep.mubr.f32.mxu0 0.0
    %1585 = vmatmul.mubr.f32.gmra.mrb[0].mxu0 %v1515
    %v1586 = vpop.f32.mrb[0].mxu0
    %v1587 = vadd.f32 0.0, %v1586
    %v1588 = vpop.f32.mrb[0].mxu0
    %1589 = vdwg.mxu0
    %v1591 = vsel %vm1057, %v464, 0
    %v1594 = vsel %vm1057, %v760, 0
    %1596 = vmatprep.subr.mxu0 0.0
    %1597 = vmatpush1.xpose.msra.mxu0 %v1594
    %1598 = vmatprep.subr.mxu0 0.0
    %1599 = vmatpush1.xpose.msra.mxu0 0.0
    %1600 = vmatprep.subr.mxu0 0.0
    %1601 = vmatpush1.xpose.msra.mxu0 0.0
    %1602 = vmatprep.subr.mxu0 0.0
    %1603 = vmatpush1.xpose.msra.mxu0 0.0
    %1604 = vmatprep.subr.mxu0 0.0
    %1605 = vmatpush1.xpose.msra.mxu0 0.0
    %1606 = vmatprep.subr.mxu0 0.0
    %1607 = vmatpush1.xpose.msra.mxu0 0.0
    %1608 = vmatprep.subr.mxu0 0.0
    %1609 = vmatpush1.xpose.msra.mxu0 0.0
    %1610 = vmatprep.subr.mxu0 0.0
    %1611 = vmatpush1.xpose.msra.mxu0 0.0
    %1612 = vmatprep.subr.mxu0 0.0
    %1613 = vmatpush1.xpose.msra.mxu0 0.0
    %1614 = vmatprep.subr.mxu0 0.0
    %1615 = vmatpush1.xpose.msra.mxu0 0.0
    %1616 = vmatprep.subr.mxu0 0.0
    %1617 = vmatpush1.xpose.msra.mxu0 0.0
    %1618 = vmatprep.subr.mxu0 0.0
    %1619 = vmatpush1.xpose.msra.mxu0 0.0
    %1620 = vmatprep.subr.mxu0 0.0
    %1621 = vmatpush1.xpose.msra.mxu0 0.0
    %1622 = vmatprep.subr.mxu0 0.0
    %1623 = vmatpush1.xpose.msra.mxu0 0.0
    %1624 = vmatprep.subr.mxu0 0.0
    %1625 = vmatpush1.xpose.msra.mxu0 0.0
    %1626 = vmatprep.subr.mxu0 0.0
    %1627 = vmatpush1.xpose.msra.mxu0 0.0
    %1628 = vmatprep.subr.mxu0 0.0
    %1629 = vmatpush1.xpose.msra.mxu0 0.0
    %1630 = vmatprep.subr.mxu0 0.0
    %1631 = vmatpush1.xpose.msra.mxu0 0.0
    %1632 = vmatprep.subr.mxu0 0.0
    %1633 = vmatpush1.xpose.msra.mxu0 0.0
    %1634 = vmatprep.subr.mxu0 0.0
    %1635 = vmatpush1.xpose.msra.mxu0 0.0
    %1636 = vmatprep.subr.mxu0 0.0
    %1637 = vmatpush1.xpose.msra.mxu0 0.0
    %1638 = vmatprep.subr.mxu0 0.0
    %1639 = vmatpush1.xpose.msra.mxu0 0.0
    %1640 = vmatprep.subr.mxu0 0.0
    %1641 = vmatpush1.xpose.msra.mxu0 0.0
    %1642 = vmatprep.subr.mxu0 0.0
    %1643 = vmatpush1.xpose.msra.mxu0 0.0
    %1644 = vmatprep.subr.mxu0 0.0
    %1645 = vmatpush1.xpose.msra.mxu0 0.0
    %1646 = vmatprep.subr.mxu0 0.0
    %1647 = vmatpush1.xpose.msra.mxu0 0.0
    %1648 = vmatprep.subr.mxu0 0.0
    %1649 = vmatpush1.xpose.msra.mxu0 0.0
    %1650 = vmatprep.subr.mxu0 0.0
    %1651 = vmatpush1.xpose.msra.mxu0 0.0
    %1652 = vmatprep.subr.mxu0 0.0
    %1653 = vmatpush1.xpose.msra.mxu0 0.0
    %1654 = vmatprep.subr.mxu0 0.0
    %1655 = vmatpush1.xpose.msra.mxu0 0.0
    %1656 = vmatprep.subr.mxu0 0.0
    %1657 = vmatpush1.xpose.msra.mxu0 0.0
    %1658 = vmatprep.subr.mxu0 0.0
    %1659 = vmatpush1.xpose.msra.mxu0 0.0
    %1660 = vmatprep.mubr.f32.mxu0 0.0
    %1661 = vmatmul.mubr.f32.gmra.mrb[0].mxu0 %v1591
    %v1662 = vpop.f32.mrb[0].mxu0
    %v1663 = vadd.f32 0.0, %v1662
    %v1664 = vpop.f32.mrb[0].mxu0
    %1665 = vdwg.mxu0
    %v1666 = vsel %vm1057, %v1131, -inf
    %1667 = vmax.xlane.f32.xlu0 %v1666
    %v1668 = vpop.xlane.xlu0 %1667
    %v1669 = vsel %vm1057, %v1207, -inf
    %1670 = vmax.xlane.f32.xlu0 %v1669
    %v1671 = vpop.xlane.xlu0 %1670
    %v1672 = vsel %vm1057, %v1283, -inf
    %1673 = vmax.xlane.f32.xlu0 %v1672
    %v1674 = vpop.xlane.xlu0 %1673
    %v1675 = vsel %vm1057, %v1359, -inf
    %1676 = vmax.xlane.f32.xlu0 %v1675
    %v1677 = vpop.xlane.xlu0 %1676
    %v1678 = vsel %vm1057, %v1435, -inf
    %1679 = vmax.xlane.f32.xlu0 %v1678
    %v1680 = vpop.xlane.xlu0 %1679
    %v1681 = vsel %vm1057, %v1511, -inf
    %1682 = vmax.xlane.f32.xlu0 %v1681
    %v1683 = vpop.xlane.xlu0 %1682
    %v1684 = vsel %vm1057, %v1587, -inf
    %1685 = vmax.xlane.f32.xlu0 %v1684
    %v1686 = vpop.xlane.xlu0 %1685
    %v1687 = vsel %vm1057, %v1663, -inf
    %1688 = vmax.xlane.f32.xlu0 %v1687
    %v1689 = vpop.xlane.xlu0 %1688
    %v1690 = vsub.f32 %v1131, %v1668
    %v1691 = vsub.f32 %v1207, %v1671
    %v1692 = vsub.f32 %v1283, %v1674
    %v1693 = vsub.f32 %v1359, %v1677
    %v1694 = vsub.f32 %v1435, %v1680
    %v1695 = vsub.f32 %v1511, %v1683
    %v1696 = vsub.f32 %v1587, %v1686
    %v1697 = vsub.f32 %v1663, %v1689
    %v1698 = vmul.f32 %v1690, 1.442695
    %v1699 = vpow.pop %v1698
    %v1700 = vmul.f32 %v1691, 1.442695
    %v1701 = vpow.pop %v1700
    %v1702 = vmul.f32 %v1692, 1.442695
    %v1703 = vpow.pop %v1702
    %v1704 = vmul.f32 %v1693, 1.442695
    %v1705 = vpow.pop %v1704
    %v1706 = vmul.f32 %v1694, 1.442695
    %v1707 = vpow.pop %v1706
    %v1708 = vmul.f32 %v1695, 1.442695
    %v1709 = vpow.pop %v1708
    %v1710 = vmul.f32 %v1696, 1.442695
    %v1711 = vpow.pop %v1710
    %v1712 = vmul.f32 %v1697, 1.442695
    %v1713 = vpow.pop %v1712
    %v1714 = vsel %vm1057, %v1699, 0.0
    %1715 = vadd.xlane.f32.xlu0 %v1714
    %v1716 = vpop.xlane.xlu0 %1715
    %v1717 = vsel %vm1057, %v1701, 0.0
    %1718 = vadd.xlane.f32.xlu0 %v1717
    %v1719 = vpop.xlane.xlu0 %1718
    %v1720 = vsel %vm1057, %v1703, 0.0
    %1721 = vadd.xlane.f32.xlu0 %v1720
    %v1722 = vpop.xlane.xlu0 %1721
    %v1723 = vsel %vm1057, %v1705, 0.0
    %1724 = vadd.xlane.f32.xlu0 %v1723
    %v1725 = vpop.xlane.xlu0 %1724
    %v1726 = vsel %vm1057, %v1707, 0.0
    %1727 = vadd.xlane.f32.xlu0 %v1726
    %v1728 = vpop.xlane.xlu0 %1727
    %v1729 = vsel %vm1057, %v1709, 0.0
    %1730 = vadd.xlane.f32.xlu0 %v1729
    %v1731 = vpop.xlane.xlu0 %1730
    %v1732 = vsel %vm1057, %v1711, 0.0
    %1733 = vadd.xlane.f32.xlu0 %v1732
    %v1734 = vpop.xlane.xlu0 %1733
    %v1735 = vsel %vm1057, %v1713, 0.0
    %1736 = vadd.xlane.f32.xlu0 %v1735
    %v1737 = vpop.xlane.xlu0 %1736
    %v1738 = vrcp.pop %v1716
    %v1739 = vmul.f32 %v1699, %v1738
    %v1740 = vrcp.pop %v1719
    %v1741 = vmul.f32 %v1701, %v1740
    %v1742 = vrcp.pop %v1722
    %v1743 = vmul.f32 %v1703, %v1742
    %v1744 = vrcp.pop %v1725
    %v1745 = vmul.f32 %v1705, %v1744
    %v1746 = vrcp.pop %v1728
    %v1747 = vmul.f32 %v1707, %v1746
    %v1748 = vrcp.pop %v1731
    %v1749 = vmul.f32 %v1709, %v1748
    %v1750 = vrcp.pop %v1734
    %v1751 = vmul.f32 %v1711, %v1750
    %v1752 = vrcp.pop %v1737
    %v1753 = vmul.f32 %v1713, %v1752
    %1754 = vst.msk [vmem:[#allocation4] sm:$0xff] %vm1057, %v1739
    %1755 = vst.msk [vmem:[#allocation4 + $0x8] sm:$0xff] %vm1057, %v1741
    %1756 = vst.msk [vmem:[#allocation4 + $0x10] sm:$0xff] %vm1057, %v1743
    %1757 = vst.msk [vmem:[#allocation4 + $0x18] sm:$0xff] %vm1057, %v1745
    %1758 = vst.msk [vmem:[#allocation4 + $0x20] sm:$0xff] %vm1057, %v1747
    %1759 = vst.msk [vmem:[#allocation4 + $0x28] sm:$0xff] %vm1057, %v1749
    %1760 = vst.msk [vmem:[#allocation4 + $0x30] sm:$0xff] %vm1057, %v1751
    %1761 = vst.msk [vmem:[#allocation4 + $0x38] sm:$0xff] %vm1057, %v1753
    %v1763 = vsel %vm1057, %v1739, 0
    %1765 = vmatprep.subr.mxu0 0.0
    %1766 = vmatpush1.msra.mxu0 %v985
    %1767 = vmatprep.subr.mxu0 0.0
    %1768 = vmatpush1.msra.mxu0 0.0
    %1769 = vmatprep.subr.mxu0 0.0
    %1770 = vmatpush1.msra.mxu0 0.0
    %1771 = vmatprep.subr.mxu0 0.0
    %1772 = vmatpush1.msra.mxu0 0.0
    %1773 = vmatprep.subr.mxu0 0.0
    %1774 = vmatpush1.msra.mxu0 0.0
    %1775 = vmatprep.subr.mxu0 0.0
    %1776 = vmatpush1.msra.mxu0 0.0
    %1777 = vmatprep.subr.mxu0 0.0
    %1778 = vmatpush1.msra.mxu0 0.0
    %1779 = vmatprep.subr.mxu0 0.0
    %1780 = vmatpush1.msra.mxu0 0.0
    %1781 = vmatprep.subr.mxu0 0.0
    %1782 = vmatpush1.msra.mxu0 0.0
    %1783 = vmatprep.subr.mxu0 0.0
    %1784 = vmatpush1.msra.mxu0 0.0
    %1785 = vmatprep.subr.mxu0 0.0
    %1786 = vmatpush1.msra.mxu0 0.0
    %1787 = vmatprep.subr.mxu0 0.0
    %1788 = vmatpush1.msra.mxu0 0.0
    %1789 = vmatprep.subr.mxu0 0.0
    %1790 = vmatpush1.msra.mxu0 0.0
    %1791 = vmatprep.subr.mxu0 0.0
    %1792 = vmatpush1.msra.mxu0 0.0
    %1793 = vmatprep.subr.mxu0 0.0
    %1794 = vmatpush1.msra.mxu0 0.0
    %1795 = vmatprep.subr.mxu0 0.0
    %1796 = vmatpush1.msra.mxu0 0.0
    %1797 = vmatprep.subr.mxu0 0.0
    %1798 = vmatpush1.msra.mxu0 0.0
    %1799 = vmatprep.subr.mxu0 0.0
    %1800 = vmatpush1.msra.mxu0 0.0
    %1801 = vmatprep.subr.mxu0 0.0
    %1802 = vmatpush1.msra.mxu0 0.0
    %1803 = vmatprep.subr.mxu0 0.0
    %1804 = vmatpush1.msra.mxu0 0.0
    %1805 = vmatprep.subr.mxu0 0.0
    %1806 = vmatpush1.msra.mxu0 0.0
    %1807 = vmatprep.subr.mxu0 0.0
    %1808 = vmatpush1.msra.mxu0 0.0
    %1809 = vmatprep.subr.mxu0 0.0
    %1810 = vmatpush1.msra.mxu0 0.0
    %1811 = vmatprep.subr.mxu0 0.0
    %1812 = vmatpush1.msra.mxu0 0.0
    %1813 = vmatprep.subr.mxu0 0.0
    %1814 = vmatpush1.msra.mxu0 0.0
    %1815 = vmatprep.subr.mxu0 0.0
    %1816 = vmatpush1.msra.mxu0 0.0
    %1817 = vmatprep.subr.mxu0 0.0
    %1818 = vmatpush1.msra.mxu0 0.0
    %1819 = vmatprep.subr.mxu0 0.0
    %1820 = vmatpush1.msra.mxu0 0.0
    %1821 = vmatprep.subr.mxu0 0.0
    %1822 = vmatpush1.msra.mxu0 0.0
    %1823 = vmatprep.subr.mxu0 0.0
    %1824 = vmatpush1.msra.mxu0 0.0
    %1825 = vmatprep.subr.mxu0 0.0
    %1826 = vmatpush1.msra.mxu0 0.0
    %1827 = vmatprep.subr.mxu0 0.0
    %1828 = vmatpush1.msra.mxu0 0.0
    %1829 = vmatprep.mubr.f32.mxu0 0.0
    %1830 = vmatmul.mubr.f32.gmra.mrb[0].mxu0 %v1763
    %v1831 = vpop.f32.mrb[0].mxu0
    %v1832 = vadd.f32 0.0, %v1831
    %v1833 = vpop.f32.mrb[0].mxu0
    %1834 = vdwg.mxu0
    %v1836 = vsel %vm1057, %v1741, 0
    %1838 = vmatprep.subr.mxu0 0.0
    %1839 = vmatpush1.msra.mxu0 %v986
    %1840 = vmatprep.subr.mxu0 0.0
    %1841 = vmatpush1.msra.mxu0 0.0
    %1842 = vmatprep.subr.mxu0 0.0
    %1843 = vmatpush1.msra.mxu0 0.0
    %1844 = vmatprep.subr.mxu0 0.0
    %1845 = vmatpush1.msra.mxu0 0.0
    %1846 = vmatprep.subr.mxu0 0.0
    %1847 = vmatpush1.msra.mxu0 0.0
    %1848 = vmatprep.subr.mxu0 0.0
    %1849 = vmatpush1.msra.mxu0 0.0
    %1850 = vmatprep.subr.mxu0 0.0
    %1851 = vmatpush1.msra.mxu0 0.0
    %1852 = vmatprep.subr.mxu0 0.0
    %1853 = vmatpush1.msra.mxu0 0.0
    %1854 = vmatprep.subr.mxu0 0.0
    %1855 = vmatpush1.msra.mxu0 0.0
    %1856 = vmatprep.subr.mxu0 0.0
    %1857 = vmatpush1.msra.mxu0 0.0
    %1858 = vmatprep.subr.mxu0 0.0
    %1859 = vmatpush1.msra.mxu0 0.0
    %1860 = vmatprep.subr.mxu0 0.0
    %1861 = vmatpush1.msra.mxu0 0.0
    %1862 = vmatprep.subr.mxu0 0.0
    %1863 = vmatpush1.msra.mxu0 0.0
    %1864 = vmatprep.subr.mxu0 0.0
    %1865 = vmatpush1.msra.mxu0 0.0
    %1866 = vmatprep.subr.mxu0 0.0
    %1867 = vmatpush1.msra.mxu0 0.0
    %1868 = vmatprep.subr.mxu0 0.0
    %1869 = vmatpush1.msra.mxu0 0.0
    %1870 = vmatprep.subr.mxu0 0.0
    %1871 = vmatpush1.msra.mxu0 0.0
    %1872 = vmatprep.subr.mxu0 0.0
    %1873 = vmatpush1.msra.mxu0 0.0
    %1874 = vmatprep.subr.mxu0 0.0
    %1875 = vmatpush1.msra.mxu0 0.0
    %1876 = vmatprep.subr.mxu0 0.0
    %1877 = vmatpush1.msra.mxu0 0.0
    %1878 = vmatprep.subr.mxu0 0.0
    %1879 = vmatpush1.msra.mxu0 0.0
    %1880 = vmatprep.subr.mxu0 0.0
    %1881 = vmatpush1.msra.mxu0 0.0
    %1882 = vmatprep.subr.mxu0 0.0
    %1883 = vmatpush1.msra.mxu0 0.0
    %1884 = vmatprep.subr.mxu0 0.0
    %1885 = vmatpush1.msra.mxu0 0.0
    %1886 = vmatprep.subr.mxu0 0.0
    %1887 = vmatpush1.msra.mxu0 0.0
    %1888 = vmatprep.subr.mxu0 0.0
    %1889 = vmatpush1.msra.mxu0 0.0
    %1890 = vmatprep.subr.mxu0 0.0
    %1891 = vmatpush1.msra.mxu0 0.0
    %1892 = vmatprep.subr.mxu0 0.0
    %1893 = vmatpush1.msra.mxu0 0.0
    %1894 = vmatprep.subr.mxu0 0.0
    %1895 = vmatpush1.msra.mxu0 0.0
    %1896 = vmatprep.subr.mxu0 0.0
    %1897 = vmatpush1.msra.mxu0 0.0
    %1898 = vmatprep.subr.mxu0 0.0
    %1899 = vmatpush1.msra.mxu0 0.0
    %1900 = vmatprep.subr.mxu0 0.0
    %1901 = vmatpush1.msra.mxu0 0.0
    %1902 = vmatprep.mubr.f32.mxu0 0.0
    %1903 = vmatmul.mubr.f32.gmra.mrb[0].mxu0 %v1836
    %v1904 = vpop.f32.mrb[0].mxu0
    %v1905 = vadd.f32 0.0, %v1904
    %v1906 = vpop.f32.mrb[0].mxu0
    %1907 = vdwg.mxu0
    %v1909 = vsel %vm1057, %v1743, 0
    %1911 = vmatprep.subr.mxu0 0.0
    %1912 = vmatpush1.msra.mxu0 %v987
    %1913 = vmatprep.subr.mxu0 0.0
    %1914 = vmatpush1.msra.mxu0 0.0
    %1915 = vmatprep.subr.mxu0 0.0
    %1916 = vmatpush1.msra.mxu0 0.0
    %1917 = vmatprep.subr.mxu0 0.0
    %1918 = vmatpush1.msra.mxu0 0.0
    %1919 = vmatprep.subr.mxu0 0.0
    %1920 = vmatpush1.msra.mxu0 0.0
    %1921 = vmatprep.subr.mxu0 0.0
    %1922 = vmatpush1.msra.mxu0 0.0
    %1923 = vmatprep.subr.mxu0 0.0
    %1924 = vmatpush1.msra.mxu0 0.0
    %1925 = vmatprep.subr.mxu0 0.0
    %1926 = vmatpush1.msra.mxu0 0.0
    %1927 = vmatprep.subr.mxu0 0.0
    %1928 = vmatpush1.msra.mxu0 0.0
    %1929 = vmatprep.subr.mxu0 0.0
    %1930 = vmatpush1.msra.mxu0 0.0
    %1931 = vmatprep.subr.mxu0 0.0
    %1932 = vmatpush1.msra.mxu0 0.0
    %1933 = vmatprep.subr.mxu0 0.0
    %1934 = vmatpush1.msra.mxu0 0.0
    %1935 = vmatprep.subr.mxu0 0.0
    %1936 = vmatpush1.msra.mxu0 0.0
    %1937 = vmatprep.subr.mxu0 0.0
    %1938 = vmatpush1.msra.mxu0 0.0
    %1939 = vmatprep.subr.mxu0 0.0
    %1940 = vmatpush1.msra.mxu0 0.0
    %1941 = vmatprep.subr.mxu0 0.0
    %1942 = vmatpush1.msra.mxu0 0.0
    %1943 = vmatprep.subr.mxu0 0.0
    %1944 = vmatpush1.msra.mxu0 0.0
    %1945 = vmatprep.subr.mxu0 0.0
    %1946 = vmatpush1.msra.mxu0 0.0
    %1947 = vmatprep.subr.mxu0 0.0
    %1948 = vmatpush1.msra.mxu0 0.0
    %1949 = vmatprep.subr.mxu0 0.0
    %1950 = vmatpush1.msra.mxu0 0.0
    %1951 = vmatprep.subr.mxu0 0.0
    %1952 = vmatpush1.msra.mxu0 0.0
    %1953 = vmatprep.subr.mxu0 0.0
    %1954 = vmatpush1.msra.mxu0 0.0
    %1955 = vmatprep.subr.mxu0 0.0
    %1956 = vmatpush1.msra.mxu0 0.0
    %1957 = vmatprep.subr.mxu0 0.0
    %1958 = vmatpush1.msra.mxu0 0.0
    %1959 = vmatprep.subr.mxu0 0.0
    %1960 = vmatpush1.msra.mxu0 0.0
    %1961 = vmatprep.subr.mxu0 0.0
    %1962 = vmatpush1.msra.mxu0 0.0
    %1963 = vmatprep.subr.mxu0 0.0
    %1964 = vmatpush1.msra.mxu0 0.0
    %1965 = vmatprep.subr.mxu0 0.0
    %1966 = vmatpush1.msra.mxu0 0.0
    %1967 = vmatprep.subr.mxu0 0.0
    %1968 = vmatpush1.msra.mxu0 0.0
    %1969 = vmatprep.subr.mxu0 0.0
    %1970 = vmatpush1.msra.mxu0 0.0
    %1971 = vmatprep.subr.mxu0 0.0
    %1972 = vmatpush1.msra.mxu0 0.0
    %1973 = vmatprep.subr.mxu0 0.0
    %1974 = vmatpush1.msra.mxu0 0.0
    %1975 = vmatprep.mubr.f32.mxu0 0.0
    %1976 = vmatmul.mubr.f32.gmra.mrb[0].mxu0 %v1909
    %v1977 = vpop.f32.mrb[0].mxu0
    %v1978 = vadd.f32 0.0, %v1977
    %v1979 = vpop.f32.mrb[0].mxu0
    %1980 = vdwg.mxu0
    %v1982 = vsel %vm1057, %v1745, 0
    %1984 = vmatprep.subr.mxu0 0.0
    %1985 = vmatpush1.msra.mxu0 %v988
    %1986 = vmatprep.subr.mxu0 0.0
    %1987 = vmatpush1.msra.mxu0 0.0
    %1988 = vmatprep.subr.mxu0 0.0
    %1989 = vmatpush1.msra.mxu0 0.0
    %1990 = vmatprep.subr.mxu0 0.0
    %1991 = vmatpush1.msra.mxu0 0.0
    %1992 = vmatprep.subr.mxu0 0.0
    %1993 = vmatpush1.msra.mxu0 0.0
    %1994 = vmatprep.subr.mxu0 0.0
    %1995 = vmatpush1.msra.mxu0 0.0
    %1996 = vmatprep.subr.mxu0 0.0
    %1997 = vmatpush1.msra.mxu0 0.0
    %1998 = vmatprep.subr.mxu0 0.0
    %1999 = vmatpush1.msra.mxu0 0.0
    %2000 = vmatprep.subr.mxu0 0.0
    %2001 = vmatpush1.msra.mxu0 0.0
    %2002 = vmatprep.subr.mxu0 0.0
    %2003 = vmatpush1.msra.mxu0 0.0
    %2004 = vmatprep.subr.mxu0 0.0
    %2005 = vmatpush1.msra.mxu0 0.0
    %2006 = vmatprep.subr.mxu0 0.0
    %2007 = vmatpush1.msra.mxu0 0.0
    %2008 = vmatprep.subr.mxu0 0.0
    %2009 = vmatpush1.msra.mxu0 0.0
    %2010 = vmatprep.subr.mxu0 0.0
    %2011 = vmatpush1.msra.mxu0 0.0
    %2012 = vmatprep.subr.mxu0 0.0
    %2013 = vmatpush1.msra.mxu0 0.0
    %2014 = vmatprep.subr.mxu0 0.0
    %2015 = vmatpush1.msra.mxu0 0.0
    %2016 = vmatprep.subr.mxu0 0.0
    %2017 = vmatpush1.msra.mxu0 0.0
    %2018 = vmatprep.subr.mxu0 0.0
    %2019 = vmatpush1.msra.mxu0 0.0
    %2020 = vmatprep.subr.mxu0 0.0
    %2021 = vmatpush1.msra.mxu0 0.0
    %2022 = vmatprep.subr.mxu0 0.0
    %2023 = vmatpush1.msra.mxu0 0.0
    %2024 = vmatprep.subr.mxu0 0.0
    %2025 = vmatpush1.msra.mxu0 0.0
    %2026 = vmatprep.subr.mxu0 0.0
    %2027 = vmatpush1.msra.mxu0 0.0
    %2028 = vmatprep.subr.mxu0 0.0
    %2029 = vmatpush1.msra.mxu0 0.0
    %2030 = vmatprep.subr.mxu0 0.0
    %2031 = vmatpush1.msra.mxu0 0.0
    %2032 = vmatprep.subr.mxu0 0.0
    %2033 = vmatpush1.msra.mxu0 0.0
    %2034 = vmatprep.subr.mxu0 0.0
    %2035 = vmatpush1.msra.mxu0 0.0
    %2036 = vmatprep.subr.mxu0 0.0
    %2037 = vmatpush1.msra.mxu0 0.0
    %2038 = vmatprep.subr.mxu0 0.0
    %2039 = vmatpush1.msra.mxu0 0.0
    %2040 = vmatprep.subr.mxu0 0.0
    %2041 = vmatpush1.msra.mxu0 0.0
    %2042 = vmatprep.subr.mxu0 0.0
    %2043 = vmatpush1.msra.mxu0 0.0
    %2044 = vmatprep.subr.mxu0 0.0
    %2045 = vmatpush1.msra.mxu0 0.0
    %2046 = vmatprep.subr.mxu0 0.0
    %2047 = vmatpush1.msra.mxu0 0.0
    %2048 = vmatprep.mubr.f32.mxu0 0.0
    %2049 = vmatmul.mubr.f32.gmra.mrb[0].mxu0 %v1982
    %v2050 = vpop.f32.mrb[0].mxu0
    %v2051 = vadd.f32 0.0, %v2050
    %v2052 = vpop.f32.mrb[0].mxu0
    %2053 = vdwg.mxu0
    %v2055 = vsel %vm1057, %v1747, 0
    %2057 = vmatprep.subr.mxu0 0.0
    %2058 = vmatpush1.msra.mxu0 %v1053
    %2059 = vmatprep.subr.mxu0 0.0
    %2060 = vmatpush1.msra.mxu0 0.0
    %2061 = vmatprep.subr.mxu0 0.0
    %2062 = vmatpush1.msra.mxu0 0.0
    %2063 = vmatprep.subr.mxu0 0.0
    %2064 = vmatpush1.msra.mxu0 0.0
    %2065 = vmatprep.subr.mxu0 0.0
    %2066 = vmatpush1.msra.mxu0 0.0
    %2067 = vmatprep.subr.mxu0 0.0
    %2068 = vmatpush1.msra.mxu0 0.0
    %2069 = vmatprep.subr.mxu0 0.0
    %2070 = vmatpush1.msra.mxu0 0.0
    %2071 = vmatprep.subr.mxu0 0.0
    %2072 = vmatpush1.msra.mxu0 0.0
    %2073 = vmatprep.subr.mxu0 0.0
    %2074 = vmatpush1.msra.mxu0 0.0
    %2075 = vmatprep.subr.mxu0 0.0
    %2076 = vmatpush1.msra.mxu0 0.0
    %2077 = vmatprep.subr.mxu0 0.0
    %2078 = vmatpush1.msra.mxu0 0.0
    %2079 = vmatprep.subr.mxu0 0.0
    %2080 = vmatpush1.msra.mxu0 0.0
    %2081 = vmatprep.subr.mxu0 0.0
    %2082 = vmatpush1.msra.mxu0 0.0
    %2083 = vmatprep.subr.mxu0 0.0
    %2084 = vmatpush1.msra.mxu0 0.0
    %2085 = vmatprep.subr.mxu0 0.0
    %2086 = vmatpush1.msra.mxu0 0.0
    %2087 = vmatprep.subr.mxu0 0.0
    %2088 = vmatpush1.msra.mxu0 0.0
    %2089 = vmatprep.subr.mxu0 0.0
    %2090 = vmatpush1.msra.mxu0 0.0
    %2091 = vmatprep.subr.mxu0 0.0
    %2092 = vmatpush1.msra.mxu0 0.0
    %2093 = vmatprep.subr.mxu0 0.0
    %2094 = vmatpush1.msra.mxu0 0.0
    %2095 = vmatprep.subr.mxu0 0.0
    %2096 = vmatpush1.msra.mxu0 0.0
    %2097 = vmatprep.subr.mxu0 0.0
    %2098 = vmatpush1.msra.mxu0 0.0
    %2099 = vmatprep.subr.mxu0 0.0
    %2100 = vmatpush1.msra.mxu0 0.0
    %2101 = vmatprep.subr.mxu0 0.0
    %2102 = vmatpush1.msra.mxu0 0.0
    %2103 = vmatprep.subr.mxu0 0.0
    %2104 = vmatpush1.msra.mxu0 0.0
    %2105 = vmatprep.subr.mxu0 0.0
    %2106 = vmatpush1.msra.mxu0 0.0
    %2107 = vmatprep.subr.mxu0 0.0
    %2108 = vmatpush1.msra.mxu0 0.0
    %2109 = vmatprep.subr.mxu0 0.0
    %2110 = vmatpush1.msra.mxu0 0.0
    %2111 = vmatprep.subr.mxu0 0.0
    %2112 = vmatpush1.msra.mxu0 0.0
    %2113 = vmatprep.subr.mxu0 0.0
    %2114 = vmatpush1.msra.mxu0 0.0
    %2115 = vmatprep.subr.mxu0 0.0
    %2116 = vmatpush1.msra.mxu0 0.0
    %2117 = vmatprep.subr.mxu0 0.0
    %2118 = vmatpush1.msra.mxu0 0.0
    %2119 = vmatprep.subr.mxu0 0.0
    %2120 = vmatpush1.msra.mxu0 0.0
    %2121 = vmatprep.mubr.f32.mxu0 0.0
    %2122 = vmatmul.mubr.f32.gmra.mrb[0].mxu0 %v2055
    %v2123 = vpop.f32.mrb[0].mxu0
    %v2124 = vadd.f32 0.0, %v2123
    %v2125 = vpop.f32.mrb[0].mxu0
    %2126 = vdwg.mxu0
    %v2128 = vsel %vm1057, %v1749, 0
    %2130 = vmatprep.subr.mxu0 0.0
    %2131 = vmatpush1.msra.mxu0 %v1054
    %2132 = vmatprep.subr.mxu0 0.0
    %2133 = vmatpush1.msra.mxu0 0.0
    %2134 = vmatprep.subr.mxu0 0.0
    %2135 = vmatpush1.msra.mxu0 0.0
    %2136 = vmatprep.subr.mxu0 0.0
    %2137 = vmatpush1.msra.mxu0 0.0
    %2138 = vmatprep.subr.mxu0 0.0
    %2139 = vmatpush1.msra.mxu0 0.0
    %2140 = vmatprep.subr.mxu0 0.0
    %2141 = vmatpush1.msra.mxu0 0.0
    %2142 = vmatprep.subr.mxu0 0.0
    %2143 = vmatpush1.msra.mxu0 0.0
    %2144 = vmatprep.subr.mxu0 0.0
    %2145 = vmatpush1.msra.mxu0 0.0
    %2146 = vmatprep.subr.mxu0 0.0
    %2147 = vmatpush1.msra.mxu0 0.0
    %2148 = vmatprep.subr.mxu0 0.0
    %2149 = vmatpush1.msra.mxu0 0.0
    %2150 = vmatprep.subr.mxu0 0.0
    %2151 = vmatpush1.msra.mxu0 0.0
    %2152 = vmatprep.subr.mxu0 0.0
    %2153 = vmatpush1.msra.mxu0 0.0
    %2154 = vmatprep.subr.mxu0 0.0
    %2155 = vmatpush1.msra.mxu0 0.0
    %2156 = vmatprep.subr.mxu0 0.0
    %2157 = vmatpush1.msra.mxu0 0.0
    %2158 = vmatprep.subr.mxu0 0.0
    %2159 = vmatpush1.msra.mxu0 0.0
    %2160 = vmatprep.subr.mxu0 0.0
    %2161 = vmatpush1.msra.mxu0 0.0
    %2162 = vmatprep.subr.mxu0 0.0
    %2163 = vmatpush1.msra.mxu0 0.0
    %2164 = vmatprep.subr.mxu0 0.0
    %2165 = vmatpush1.msra.mxu0 0.0
    %2166 = vmatprep.subr.mxu0 0.0
    %2167 = vmatpush1.msra.mxu0 0.0
    %2168 = vmatprep.subr.mxu0 0.0
    %2169 = vmatpush1.msra.mxu0 0.0
    %2170 = vmatprep.subr.mxu0 0.0
    %2171 = vmatpush1.msra.mxu0 0.0
    %2172 = vmatprep.subr.mxu0 0.0
    %2173 = vmatpush1.msra.mxu0 0.0
    %2174 = vmatprep.subr.mxu0 0.0
    %2175 = vmatpush1.msra.mxu0 0.0
    %2176 = vmatprep.subr.mxu0 0.0
    %2177 = vmatpush1.msra.mxu0 0.0
    %2178 = vmatprep.subr.mxu0 0.0
    %2179 = vmatpush1.msra.mxu0 0.0
    %2180 = vmatprep.subr.mxu0 0.0
    %2181 = vmatpush1.msra.mxu0 0.0
    %2182 = vmatprep.subr.mxu0 0.0
    %2183 = vmatpush1.msra.mxu0 0.0
    %2184 = vmatprep.subr.mxu0 0.0
    %2185 = vmatpush1.msra.mxu0 0.0
    %2186 = vmatprep.subr.mxu0 0.0
    %2187 = vmatpush1.msra.mxu0 0.0
    %2188 = vmatprep.subr.mxu0 0.0
    %2189 = vmatpush1.msra.mxu0 0.0
    %2190 = vmatprep.subr.mxu0 0.0
    %2191 = vmatpush1.msra.mxu0 0.0
    %2192 = vmatprep.subr.mxu0 0.0
    %2193 = vmatpush1.msra.mxu0 0.0
    %2194 = vmatprep.mubr.f32.mxu0 0.0
    %2195 = vmatmul.mubr.f32.gmra.mrb[0].mxu0 %v2128
    %v2196 = vpop.f32.mrb[0].mxu0
    %v2197 = vadd.f32 0.0, %v2196
    %v2198 = vpop.f32.mrb[0].mxu0
    %2199 = vdwg.mxu0
    %v2201 = vsel %vm1057, %v1751, 0
    %2203 = vmatprep.subr.mxu0 0.0
    %2204 = vmatpush1.msra.mxu0 %v1055
    %2205 = vmatprep.subr.mxu0 0.0
    %2206 = vmatpush1.msra.mxu0 0.0
    %2207 = vmatprep.subr.mxu0 0.0
    %2208 = vmatpush1.msra.mxu0 0.0
    %2209 = vmatprep.subr.mxu0 0.0
    %2210 = vmatpush1.msra.mxu0 0.0
    %2211 = vmatprep.subr.mxu0 0.0
    %2212 = vmatpush1.msra.mxu0 0.0
    %2213 = vmatprep.subr.mxu0 0.0
    %2214 = vmatpush1.msra.mxu0 0.0
    %2215 = vmatprep.subr.mxu0 0.0
    %2216 = vmatpush1.msra.mxu0 0.0
    %2217 = vmatprep.subr.mxu0 0.0
    %2218 = vmatpush1.msra.mxu0 0.0
    %2219 = vmatprep.subr.mxu0 0.0
    %2220 = vmatpush1.msra.mxu0 0.0
    %2221 = vmatprep.subr.mxu0 0.0
    %2222 = vmatpush1.msra.mxu0 0.0
    %2223 = vmatprep.subr.mxu0 0.0
    %2224 = vmatpush1.msra.mxu0 0.0
    %2225 = vmatprep.subr.mxu0 0.0
    %2226 = vmatpush1.msra.mxu0 0.0
    %2227 = vmatprep.subr.mxu0 0.0
    %2228 = vmatpush1.msra.mxu0 0.0
    %2229 = vmatprep.subr.mxu0 0.0
    %2230 = vmatpush1.msra.mxu0 0.0
    %2231 = vmatprep.subr.mxu0 0.0
    %2232 = vmatpush1.msra.mxu0 0.0
    %2233 = vmatprep.subr.mxu0 0.0
    %2234 = vmatpush1.msra.mxu0 0.0
    %2235 = vmatprep.subr.mxu0 0.0
    %2236 = vmatpush1.msra.mxu0 0.0
    %2237 = vmatprep.subr.mxu0 0.0
    %2238 = vmatpush1.msra.mxu0 0.0
    %2239 = vmatprep.subr.mxu0 0.0
    %2240 = vmatpush1.msra.mxu0 0.0
    %2241 = vmatprep.subr.mxu0 0.0
    %2242 = vmatpush1.msra.mxu0 0.0
    %2243 = vmatprep.subr.mxu0 0.0
    %2244 = vmatpush1.msra.mxu0 0.0
    %2245 = vmatprep.subr.mxu0 0.0
    %2246 = vmatpush1.msra.mxu0 0.0
    %2247 = vmatprep.subr.mxu0 0.0
    %2248 = vmatpush1.msra.mxu0 0.0
    %2249 = vmatprep.subr.mxu0 0.0
    %2250 = vmatpush1.msra.mxu0 0.0
    %2251 = vmatprep.subr.mxu0 0.0
    %2252 = vmatpush1.msra.mxu0 0.0
    %2253 = vmatprep.subr.mxu0 0.0
    %2254 = vmatpush1.msra.mxu0 0.0
    %2255 = vmatprep.subr.mxu0 0.0
    %2256 = vmatpush1.msra.mxu0 0.0
    %2257 = vmatprep.subr.mxu0 0.0
    %2258 = vmatpush1.msra.mxu0 0.0
    %2259 = vmatprep.subr.mxu0 0.0
    %2260 = vmatpush1.msra.mxu0 0.0
    %2261 = vmatprep.subr.mxu0 0.0
    %2262 = vmatpush1.msra.mxu0 0.0
    %2263 = vmatprep.subr.mxu0 0.0
    %2264 = vmatpush1.msra.mxu0 0.0
    %2265 = vmatprep.subr.mxu0 0.0
    %2266 = vmatpush1.msra.mxu0 0.0
    %2267 = vmatprep.mubr.f32.mxu0 0.0
    %2268 = vmatmul.mubr.f32.gmra.mrb[0].mxu0 %v2201
    %v2269 = vpop.f32.mrb[0].mxu0
    %v2270 = vadd.f32 0.0, %v2269
    %v2271 = vpop.f32.mrb[0].mxu0
    %2272 = vdwg.mxu0
    %v2274 = vsel %vm1057, %v1753, 0
    %2276 = vmatprep.subr.mxu0 0.0
    %2277 = vmatpush1.msra.mxu0 %v1056
    %2278 = vmatprep.subr.mxu0 0.0
    %2279 = vmatpush1.msra.mxu0 0.0
    %2280 = vmatprep.subr.mxu0 0.0
    %2281 = vmatpush1.msra.mxu0 0.0
    %2282 = vmatprep.subr.mxu0 0.0
    %2283 = vmatpush1.msra.mxu0 0.0
    %2284 = vmatprep.subr.mxu0 0.0
    %2285 = vmatpush1.msra.mxu0 0.0
    %2286 = vmatprep.subr.mxu0 0.0
    %2287 = vmatpush1.msra.mxu0 0.0
    %2288 = vmatprep.subr.mxu0 0.0
    %2289 = vmatpush1.msra.mxu0 0.0
    %2290 = vmatprep.subr.mxu0 0.0
    %2291 = vmatpush1.msra.mxu0 0.0
    %2292 = vmatprep.subr.mxu0 0.0
    %2293 = vmatpush1.msra.mxu0 0.0
    %2294 = vmatprep.subr.mxu0 0.0
    %2295 = vmatpush1.msra.mxu0 0.0
    %2296 = vmatprep.subr.mxu0 0.0
    %2297 = vmatpush1.msra.mxu0 0.0
    %2298 = vmatprep.subr.mxu0 0.0
    %2299 = vmatpush1.msra.mxu0 0.0
    %2300 = vmatprep.subr.mxu0 0.0
    %2301 = vmatpush1.msra.mxu0 0.0
    %2302 = vmatprep.subr.mxu0 0.0
    %2303 = vmatpush1.msra.mxu0 0.0
    %2304 = vmatprep.subr.mxu0 0.0
    %2305 = vmatpush1.msra.mxu0 0.0
    %2306 = vmatprep.subr.mxu0 0.0
    %2307 = vmatpush1.msra.mxu0 0.0
    %2308 = vmatprep.subr.mxu0 0.0
    %2309 = vmatpush1.msra.mxu0 0.0
    %2310 = vmatprep.subr.mxu0 0.0
    %2311 = vmatpush1.msra.mxu0 0.0
    %2312 = vmatprep.subr.mxu0 0.0
    %2313 = vmatpush1.msra.mxu0 0.0
    %2314 = vmatprep.subr.mxu0 0.0
    %2315 = vmatpush1.msra.mxu0 0.0
    %2316 = vmatprep.subr.mxu0 0.0
    %2317 = vmatpush1.msra.mxu0 0.0
    %2318 = vmatprep.subr.mxu0 0.0
    %2319 = vmatpush1.msra.mxu0 0.0
    %2320 = vmatprep.subr.mxu0 0.0
    %2321 = vmatpush1.msra.mxu0 0.0
    %2322 = vmatprep.subr.mxu0 0.0
    %2323 = vmatpush1.msra.mxu0 0.0
    %2324 = vmatprep.subr.mxu0 0.0
    %2325 = vmatpush1.msra.mxu0 0.0
    %2326 = vmatprep.subr.mxu0 0.0
    %2327 = vmatpush1.msra.mxu0 0.0
    %2328 = vmatprep.subr.mxu0 0.0
    %2329 = vmatpush1.msra.mxu0 0.0
    %2330 = vmatprep.subr.mxu0 0.0
    %2331 = vmatpush1.msra.mxu0 0.0
    %2332 = vmatprep.subr.mxu0 0.0
    %2333 = vmatpush1.msra.mxu0 0.0
    %2334 = vmatprep.subr.mxu0 0.0
    %2335 = vmatpush1.msra.mxu0 0.0
    %2336 = vmatprep.subr.mxu0 0.0
    %2337 = vmatpush1.msra.mxu0 0.0
    %2338 = vmatprep.subr.mxu0 0.0
    %2339 = vmatpush1.msra.mxu0 0.0
    %2340 = vmatprep.mubr.f32.mxu0 0.0
    %2341 = vmatmul.mubr.f32.gmra.mrb[0].mxu0 %v2274
    %v2342 = vpop.f32.mrb[0].mxu0
    %v2343 = vadd.f32 0.0, %v2342
    %v2344 = vpop.f32.mrb[0].mxu0
    %2345 = vdwg.mxu0
    %v2346 = vcombine.low %v1832, %v1978
    %v2347 = vcombine.high %v1832, %v1978
    %v2349 = vunpack.c.l.s4 1983009808
    %v2350 = vunpack.c.0.s8 %v2349
    %v2351 = vlaneseq
    %v2352 = vshrl.u32 %v2351, 7
    %v2353 = vsub.s32 %v2350, %v2352
    %v2354 = vrot.slane %v2346, %v2353
    %v2356 = vunpack.c.l.s4 1983009808
    %v2357 = vunpack.c.0.s8 %v2356
    %v2358 = vlaneseq
    %v2359 = vshrl.u32 %v2358, 7
    %v2360 = vsub.s32 %v2357, %v2359
    %v2361 = vrot.slane %v2347, %v2360
    %v2362 = vcombine.low %v1905, %v2051
    %v2363 = vcombine.high %v1905, %v2051
    %v2365 = vunpack.c.l.s4 1983009808
    %v2366 = vunpack.c.0.s8 %v2365
    %v2367 = vlaneseq
    %v2368 = vshrl.u32 %v2367, 7
    %v2369 = vsub.s32 %v2366, %v2368
    %v2370 = vrot.slane %v2362, %v2369
    %v2372 = vunpack.c.l.s4 1983009808
    %v2373 = vunpack.c.0.s8 %v2372
    %v2374 = vlaneseq
    %v2375 = vshrl.u32 %v2374, 7
    %v2376 = vsub.s32 %v2373, %v2375
    %v2377 = vrot.slane %v2363, %v2376
    %v2378 = vcombine.low %v2354, %v2370
    %v2379 = vcombine.high %v2354, %v2370
    %v2381 = vunpack.c.l.s4 1934713408
    %v2382 = vunpack.c.0.s8 %v2381
    %v2383 = vlaneseq
    %v2384 = vshrl.u32 %v2383, 7
    %v2385 = vsub.s32 %v2382, %v2384
    %v2386 = vrot.slane %v2378, %v2385
    %v2388 = vunpack.c.l.s4 1934713408
    %v2389 = vunpack.c.0.s8 %v2388
    %v2390 = vlaneseq
    %v2391 = vshrl.u32 %v2390, 7
    %v2392 = vsub.s32 %v2389, %v2391
    %v2393 = vrot.slane %v2379, %v2392
    %v2394 = vcombine.low %v2361, %v2377
    %v2395 = vcombine.high %v2361, %v2377
    %v2397 = vunpack.c.l.s4 1934713408
    %v2398 = vunpack.c.0.s8 %v2397
    %v2399 = vlaneseq
    %v2400 = vshrl.u32 %v2399, 7
    %v2401 = vsub.s32 %v2398, %v2400
    %v2402 = vrot.slane %v2394, %v2401
    %v2404 = vunpack.c.l.s4 1934713408
    %v2405 = vunpack.c.0.s8 %v2404
    %v2406 = vlaneseq
    %v2407 = vshrl.u32 %v2406, 7
    %v2408 = vsub.s32 %v2405, %v2407
    %v2409 = vrot.slane %v2395, %v2408
    %v2410 = vcombine.high %v2386, 0.0
    %v2411 = vcombine.high %v2393, 0.0
    %v2412 = vcombine.high %v2402, 0.0
    %v2413 = vcombine.high %v2409, 0.0
    %v2414 = vcombine.low %v2124, %v2270
    %v2415 = vcombine.high %v2124, %v2270
    %v2417 = vunpack.c.l.s4 1983009808
    %v2418 = vunpack.c.0.s8 %v2417
    %v2419 = vlaneseq
    %v2420 = vshrl.u32 %v2419, 7
    %v2421 = vsub.s32 %v2418, %v2420
    %v2422 = vrot.slane %v2414, %v2421
    %v2424 = vunpack.c.l.s4 1983009808
    %v2425 = vunpack.c.0.s8 %v2424
    %v2426 = vlaneseq
    %v2427 = vshrl.u32 %v2426, 7
    %v2428 = vsub.s32 %v2425, %v2427
    %v2429 = vrot.slane %v2415, %v2428
    %v2430 = vcombine.low %v2197, %v2343
    %v2431 = vcombine.high %v2197, %v2343
    %v2433 = vunpack.c.l.s4 1983009808
    %v2434 = vunpack.c.0.s8 %v2433
    %v2435 = vlaneseq
    %v2436 = vshrl.u32 %v2435, 7
    %v2437 = vsub.s32 %v2434, %v2436
    %v2438 = vrot.slane %v2430, %v2437
    %v2440 = vunpack.c.l.s4 1983009808
    %v2441 = vunpack.c.0.s8 %v2440
    %v2442 = vlaneseq
    %v2443 = vshrl.u32 %v2442, 7
    %v2444 = vsub.s32 %v2441, %v2443
    %v2445 = vrot.slane %v2431, %v2444
    %v2446 = vcombine.low %v2422, %v2438
    %v2447 = vcombine.high %v2422, %v2438
    %v2449 = vunpack.c.l.s4 1934713408
    %v2450 = vunpack.c.0.s8 %v2449
    %v2451 = vlaneseq
    %v2452 = vshrl.u32 %v2451, 7
    %v2453 = vsub.s32 %v2450, %v2452
    %v2454 = vrot.slane %v2446, %v2453
    %v2456 = vunpack.c.l.s4 1934713408
    %v2457 = vunpack.c.0.s8 %v2456
    %v2458 = vlaneseq
    %v2459 = vshrl.u32 %v2458, 7
    %v2460 = vsub.s32 %v2457, %v2459
    %v2461 = vrot.slane %v2447, %v2460
    %v2462 = vcombine.low %v2429, %v2445
    %v2463 = vcombine.high %v2429, %v2445
    %v2465 = vunpack.c.l.s4 1934713408
    %v2466 = vunpack.c.0.s8 %v2465
    %v2467 = vlaneseq
    %v2468 = vshrl.u32 %v2467, 7
    %v2469 = vsub.s32 %v2466, %v2468
    %v2470 = vrot.slane %v2462, %v2469
    %v2472 = vunpack.c.l.s4 1934713408
    %v2473 = vunpack.c.0.s8 %v2472
    %v2474 = vlaneseq
    %v2475 = vshrl.u32 %v2474, 7
    %v2476 = vsub.s32 %v2473, %v2475
    %v2477 = vrot.slane %v2463, %v2476
    %v2478 = vcombine.high %v2454, 0.0
    %v2479 = vcombine.high %v2461, 0.0
    %v2480 = vcombine.high %v2470, 0.0
    %v2481 = vcombine.high %v2477, 0.0
    %v2482 = vcombine.low %v2386, %v2393
    %v2484 = vunpack.c.l.s4 1983009808
    %v2485 = vunpack.c.0.s8 %v2484
    %v2486 = vlaneseq
    %v2487 = vshrl.u32 %v2486, 7
    %v2488 = vsub.s32 %v2485, %v2487
    %v2489 = vrot.slane %v2482, %v2488
    %v2490 = vcombine.low %v2410, %v2411
    %v2492 = vunpack.c.l.s4 1983009808
    %v2493 = vunpack.c.0.s8 %v2492
    %v2494 = vlaneseq
    %v2495 = vshrl.u32 %v2494, 7
    %v2496 = vsub.s32 %v2493, %v2495
    %v2497 = vrot.slane %v2490, %v2496
    %v2498 = vcombine.low %v2402, %v2409
    %v2500 = vunpack.c.l.s4 1983009808
    %v2501 = vunpack.c.0.s8 %v2500
    %v2502 = vlaneseq
    %v2503 = vshrl.u32 %v2502, 7
    %v2504 = vsub.s32 %v2501, %v2503
    %v2505 = vrot.slane %v2498, %v2504
    %v2506 = vcombine.low %v2412, %v2413
    %v2508 = vunpack.c.l.s4 1983009808
    %v2509 = vunpack.c.0.s8 %v2508
    %v2510 = vlaneseq
    %v2511 = vshrl.u32 %v2510, 7
    %v2512 = vsub.s32 %v2509, %v2511
    %v2513 = vrot.slane %v2506, %v2512
    %v2514 = vcombine.low %v2489, %v2497
    %v2515 = vcombine.high %v2489, %v2497
    %v2517 = vunpack.c.l.s4 1934713408
    %v2518 = vunpack.c.0.s8 %v2517
    %v2519 = vlaneseq
    %v2520 = vshrl.u32 %v2519, 7
    %v2521 = vsub.s32 %v2518, %v2520
    %v2522 = vrot.slane %v2514, %v2521
    %v2524 = vunpack.c.l.s4 1934713408
    %v2525 = vunpack.c.0.s8 %v2524
    %v2526 = vlaneseq
    %v2527 = vshrl.u32 %v2526, 7
    %v2528 = vsub.s32 %v2525, %v2527
    %v2529 = vrot.slane %v2515, %v2528
    %v2530 = vcombine.low %v2505, %v2513
    %v2531 = vcombine.high %v2505, %v2513
    %v2533 = vunpack.c.l.s4 1934713408
    %v2534 = vunpack.c.0.s8 %v2533
    %v2535 = vlaneseq
    %v2536 = vshrl.u32 %v2535, 7
    %v2537 = vsub.s32 %v2534, %v2536
    %v2538 = vrot.slane %v2530, %v2537
    %v2540 = vunpack.c.l.s4 1934713408
    %v2541 = vunpack.c.0.s8 %v2540
    %v2542 = vlaneseq
    %v2543 = vshrl.u32 %v2542, 7
    %v2544 = vsub.s32 %v2541, %v2543
    %v2545 = vrot.slane %v2531, %v2544
    %v2546 = vcombine.low %v2522, %v2538
    %v2547 = vcombine.high %v2522, %v2538
    %v2548 = vcombine.low %v2529, %v2545
    %v2549 = vcombine.high %v2529, %v2545
    %v2550 = vcombine.low %v2454, %v2461
    %v2552 = vunpack.c.l.s4 1983009808
    %v2553 = vunpack.c.0.s8 %v2552
    %v2554 = vlaneseq
    %v2555 = vshrl.u32 %v2554, 7
    %v2556 = vsub.s32 %v2553, %v2555
    %v2557 = vrot.slane %v2550, %v2556
    %v2558 = vcombine.low %v2478, %v2479
    %v2560 = vunpack.c.l.s4 1983009808
    %v2561 = vunpack.c.0.s8 %v2560
    %v2562 = vlaneseq
    %v2563 = vshrl.u32 %v2562, 7
    %v2564 = vsub.s32 %v2561, %v2563
    %v2565 = vrot.slane %v2558, %v2564
    %v2566 = vcombine.low %v2470, %v2477
    %v2568 = vunpack.c.l.s4 1983009808
    %v2569 = vunpack.c.0.s8 %v2568
    %v2570 = vlaneseq
    %v2571 = vshrl.u32 %v2570, 7
    %v2572 = vsub.s32 %v2569, %v2571
    %v2573 = vrot.slane %v2566, %v2572
    %v2574 = vcombine.low %v2480, %v2481
    %v2576 = vunpack.c.l.s4 1983009808
    %v2577 = vunpack.c.0.s8 %v2576
    %v2578 = vlaneseq
    %v2579 = vshrl.u32 %v2578, 7
    %v2580 = vsub.s32 %v2577, %v2579
    %v2581 = vrot.slane %v2574, %v2580
    %v2582 = vcombine.low %v2557, %v2565
    %v2583 = vcombine.high %v2557, %v2565
    %v2585 = vunpack.c.l.s4 1934713408
    %v2586 = vunpack.c.0.s8 %v2585
    %v2587 = vlaneseq
    %v2588 = vshrl.u32 %v2587, 7
    %v2589 = vsub.s32 %v2586, %v2588
    %v2590 = vrot.slane %v2582, %v2589
    %v2592 = vunpack.c.l.s4 1934713408
    %v2593 = vunpack.c.0.s8 %v2592
    %v2594 = vlaneseq
    %v2595 = vshrl.u32 %v2594, 7
    %v2596 = vsub.s32 %v2593, %v2595
    %v2597 = vrot.slane %v2583, %v2596
    %v2598 = vcombine.low %v2573, %v2581
    %v2599 = vcombine.high %v2573, %v2581
    %v2601 = vunpack.c.l.s4 1934713408
    %v2602 = vunpack.c.0.s8 %v2601
    %v2603 = vlaneseq
    %v2604 = vshrl.u32 %v2603, 7
    %v2605 = vsub.s32 %v2602, %v2604
    %v2606 = vrot.slane %v2598, %v2605
    %v2608 = vunpack.c.l.s4 1934713408
    %v2609 = vunpack.c.0.s8 %v2608
    %v2610 = vlaneseq
    %v2611 = vshrl.u32 %v2610, 7
    %v2612 = vsub.s32 %v2609, %v2611
    %v2613 = vrot.slane %v2599, %v2612
    %v2614 = vcombine.low %v2590, %v2606
    %v2615 = vcombine.high %v2590, %v2606
    %v2616 = vcombine.low %v2597, %v2613
    %v2617 = vcombine.high %v2597, %v2613
    %2620 = vrot.lane.b32.xlu0 %v2547, 8
    %v2621 = vpop.permute.xlu0 %2620
    %2622 = vrot.lane.b32.xlu0 %v2615, 8
    %v2623 = vpop.permute.xlu0 %2622
    %2628 = vrot.lane.b32.xlu0 %v2548, 16
    %v2629 = vpop.permute.xlu0 %2628
    %2630 = vrot.lane.b32.xlu0 %v2616, 16
    %v2631 = vpop.permute.xlu0 %2630
    %2636 = vrot.lane.b32.xlu0 %v2549, 24
    %v2637 = vpop.permute.xlu0 %2636
    %2638 = vrot.lane.b32.xlu0 %v2617, 24
    %v2639 = vpop.permute.xlu0 %2638
    %v2642 = vsel %vm1057, %v2546, %v2621
    %v2643 = vsel %vm1057, %v2614, %v2623
    %vm2644 = vcmask 130048
    %v2645 = vsel %vm2644, %v2642, %v2629
    %v2646 = vsel %vm2644, %v2643, %v2631
    %vm2647 = vcmask 195584
    %v2648 = vsel %vm2647, %v2645, %v2637
    %v2649 = vsel %vm2647, %v2646, %v2639
    %v2650 = vld [vmem:[%s2] sm:$0xff]
    %v2651 = vld [vmem:[%s2 + $0x8] sm:$0xff]
    %v2652 = vld [vmem:[%s2 + $0x10] sm:$0xff]
    %v2653 = vld [vmem:[%s2 + $0x18] sm:$0xff]
    %v2654 = vlaneseq
    %v2655 = vshrl.u32 %v2654, 7
    %v2656 = vsub.s32 0, %v2655
    %v2657 = vrot.slane %v39, %v2656
    %v2659 = vsel %vm41, %v2648, 0
    %v2662 = vsel %vm41, %v2649, 0
    %2664 = vmatprep.subr.mxu0 0.0
    %2665 = vmatpush1.msra.mxu0 %v2650
    %2666 = vmatprep.subr.mxu0 0.0
    %2667 = vmatpush1.msra.mxu0 %v2651
    %2668 = vmatprep.subr.mxu0 0.0
    %2669 = vmatpush1.msra.mxu0 %v2652
    %2670 = vmatprep.subr.mxu0 0.0
    %2671 = vmatpush1.msra.mxu0 %v2653
    %2672 = vmatprep.subr.mxu0 0.0
    %2673 = vmatpush1.msra.mxu0 0.0
    %2674 = vmatprep.subr.mxu0 0.0
    %2675 = vmatpush1.msra.mxu0 0.0
    %2676 = vmatprep.subr.mxu0 0.0
    %2677 = vmatpush1.msra.mxu0 0.0
    %2678 = vmatprep.subr.mxu0 0.0
    %2679 = vmatpush1.msra.mxu0 0.0
    %2680 = vmatprep.subr.mxu0 0.0
    %2681 = vmatpush1.msra.mxu0 0.0
    %2682 = vmatprep.subr.mxu0 0.0
    %2683 = vmatpush1.msra.mxu0 0.0
    %2684 = vmatprep.subr.mxu0 0.0
    %2685 = vmatpush1.msra.mxu0 0.0
    %2686 = vmatprep.subr.mxu0 0.0
    %2687 = vmatpush1.msra.mxu0 0.0
    %2688 = vmatprep.subr.mxu0 0.0
    %2689 = vmatpush1.msra.mxu0 0.0
    %2690 = vmatprep.subr.mxu0 0.0
    %2691 = vmatpush1.msra.mxu0 0.0
    %2692 = vmatprep.subr.mxu0 0.0
    %2693 = vmatpush1.msra.mxu0 0.0
    %2694 = vmatprep.subr.mxu0 0.0
    %2695 = vmatpush1.msra.mxu0 0.0
    %2696 = vmatprep.subr.mxu0 0.0
    %2697 = vmatpush1.msra.mxu0 0.0
    %2698 = vmatprep.subr.mxu0 0.0
    %2699 = vmatpush1.msra.mxu0 0.0
    %2700 = vmatprep.subr.mxu0 0.0
    %2701 = vmatpush1.msra.mxu0 0.0
    %2702 = vmatprep.subr.mxu0 0.0
    %2703 = vmatpush1.msra.mxu0 0.0
    %2704 = vmatprep.subr.mxu0 0.0
    %2705 = vmatpush1.msra.mxu0 0.0
    %2706 = vmatprep.subr.mxu0 0.0
    %2707 = vmatpush1.msra.mxu0 0.0
    %2708 = vmatprep.subr.mxu0 0.0
    %2709 = vmatpush1.msra.mxu0 0.0
    %2710 = vmatprep.subr.mxu0 0.0
    %2711 = vmatpush1.msra.mxu0 0.0
    %2712 = vmatprep.subr.mxu0 0.0
    %2713 = vmatpush1.msra.mxu0 0.0
    %2714 = vmatprep.subr.mxu0 0.0
    %2715 = vmatpush1.msra.mxu0 0.0
    %2716 = vmatprep.subr.mxu0 0.0
    %2717 = vmatpush1.msra.mxu0 0.0
    %2718 = vmatprep.subr.mxu0 0.0
    %2719 = vmatpush1.msra.mxu0 0.0
    %2720 = vmatprep.subr.mxu0 0.0
    %2721 = vmatpush1.msra.mxu0 0.0
    %2722 = vmatprep.subr.mxu0 0.0
    %2723 = vmatpush1.msra.mxu0 0.0
    %2724 = vmatprep.subr.mxu0 0.0
    %2725 = vmatpush1.msra.mxu0 0.0
    %2726 = vmatprep.subr.mxu0 0.0
    %2727 = vmatpush1.msra.mxu0 0.0
    %2728 = vmatprep.mubr.f32.mxu0 0.0
    %2729 = vmatmul.mubr.f32.gmra.mrb[0].mxu0 %v2659
    %v2730 = vpop.f32.mrb[0].mxu0
    %v2731 = vadd.f32 %v2657, %v2730
    %v2732 = vpop.f32.mrb[0].mxu0
    %2733 = vmatprep.mubr.f32.mxu0 0.0
    %2734 = vmatmul.mubr.f32.gmra.mrb[0].mxu0 %v2662
    %v2735 = vpop.f32.mrb[0].mxu0
    %v2736 = vadd.f32 %v2657, %v2735
    %v2737 = vpop.f32.mrb[0].mxu0
    %2738 = vdwg.mxu0
    %v2739 = vadd.f32 %v2731, %v33
    %v2740 = vadd.f32 %v2736, %v34
    %v2741 = vsel %vm41, %v2739, 0.0
    %2742 = vadd.xlane.f32.xlu0 %v2741
    %v2743 = vpop.xlane.xlu0 %2742
    %v2744 = vsel %vm41, %v2740, 0.0
    %2745 = vadd.xlane.f32.xlu0 %v2744
    %v2746 = vpop.xlane.xlu0 %2745
    %v2747 = vmul.f32 %v2743, %v48
    %v2748 = vmul.f32 %v2746, %v48
    %v2749 = vsub.f32 %v2739, %v2747
    %v2750 = vsub.f32 %v2740, %v2748
    %v2751 = vmul.f32 %v2749, %v2749
    %v2752 = vmul.f32 %v2750, %v2750
    %v2753 = vsel %vm41, %v2751, 0.0
    %2754 = vadd.xlane.f32.xlu0 %v2753
    %v2755 = vpop.xlane.xlu0 %2754
    %v2756 = vsel %vm41, %v2752, 0.0
    %2757 = vadd.xlane.f32.xlu0 %v2756
    %v2758 = vpop.xlane.xlu0 %2757
    %v2759 = vmul.f32 %v2755, %v48
    %v2760 = vmul.f32 %v2758, %v48
    %v2761 = vadd.f32 %v2759, 1e-12
    %v2762 = vadd.f32 %v2760, 1e-12
    %v2763 = vrsqrt.pop %v2761
    %v2764 = vrsqrt.pop %v2762
    %v2765 = vmul.f32 %v2749, %v2763
    %v2766 = vmul.f32 %v2750, %v2764
    %v2767 = vlaneseq
    %v2768 = vshrl.u32 %v2767, 7
    %v2769 = vsub.s32 0, %v2768
    %v2770 = vrot.slane %v37, %v2769
    %v2771 = vmul.f32 %v2765, %v2770
    %v2772 = vmul.f32 %v2766, %v2770
    %v2773 = vlaneseq
    %v2774 = vshrl.u32 %v2773, 7
    %v2775 = vsub.s32 0, %v2774
    %v2776 = vrot.slane %v38, %v2775
    %v2777 = vadd.f32 %v2771, %v2776
    %v2778 = vadd.f32 %v2772, %v2776
    %v2779 = vld [vmem:[%s3] sm:$0xff]
    %v2780 = vld [vmem:[%s3 + $0x8] sm:$0xff]
    %v2781 = vld [vmem:[%s3 + $0x10] sm:$0xff]
    %v2782 = vld [vmem:[%s3 + $0x18] sm:$0xff]
    %v2783 = vld [vmem:[%s7] sm:$0x1]
    %v2785 = vlaneseq
    %v2786 = vshrl.u32 %v2785, 7
    %v2787 = vsub.s32 0, %v2786
    %v2788 = vrot.slane %v2783, %v2787
    %v2791 = vsel %vm41, %v2777, 0
    %v2794 = vsel %vm41, %v2778, 0
    %2796 = vmatprep.subr.mxu0 0.0
    %2797 = vmatpush1.msra.mxu0 %v2779
    %2798 = vmatprep.subr.mxu0 0.0
    %2799 = vmatpush1.msra.mxu0 %v2780
    %2800 = vmatprep.subr.mxu0 0.0
    %2801 = vmatpush1.msra.mxu0 %v2781
    %2802 = vmatprep.subr.mxu0 0.0
    %2803 = vmatpush1.msra.mxu0 %v2782
    %2804 = vmatprep.subr.mxu0 0.0
    %2805 = vmatpush1.msra.mxu0 0.0
    %2806 = vmatprep.subr.mxu0 0.0
    %2807 = vmatpush1.msra.mxu0 0.0
    %2808 = vmatprep.subr.mxu0 0.0
    %2809 = vmatpush1.msra.mxu0 0.0
    %2810 = vmatprep.subr.mxu0 0.0
    %2811 = vmatpush1.msra.mxu0 0.0
    %2812 = vmatprep.subr.mxu0 0.0
    %2813 = vmatpush1.msra.mxu0 0.0
    %2814 = vmatprep.subr.mxu0 0.0
    %2815 = vmatpush1.msra.mxu0 0.0
    %2816 = vmatprep.subr.mxu0 0.0
    %2817 = vmatpush1.msra.mxu0 0.0
    %2818 = vmatprep.subr.mxu0 0.0
    %2819 = vmatpush1.msra.mxu0 0.0
    %2820 = vmatprep.subr.mxu0 0.0
    %2821 = vmatpush1.msra.mxu0 0.0
    %2822 = vmatprep.subr.mxu0 0.0
    %2823 = vmatpush1.msra.mxu0 0.0
    %2824 = vmatprep.subr.mxu0 0.0
    %2825 = vmatpush1.msra.mxu0 0.0
    %2826 = vmatprep.subr.mxu0 0.0
    %2827 = vmatpush1.msra.mxu0 0.0
    %2828 = vmatprep.subr.mxu0 0.0
    %2829 = vmatpush1.msra.mxu0 0.0
    %2830 = vmatprep.subr.mxu0 0.0
    %2831 = vmatpush1.msra.mxu0 0.0
    %2832 = vmatprep.subr.mxu0 0.0
    %2833 = vmatpush1.msra.mxu0 0.0
    %2834 = vmatprep.subr.mxu0 0.0
    %2835 = vmatpush1.msra.mxu0 0.0
    %2836 = vmatprep.subr.mxu0 0.0
    %2837 = vmatpush1.msra.mxu0 0.0
    %2838 = vmatprep.subr.mxu0 0.0
    %2839 = vmatpush1.msra.mxu0 0.0
    %2840 = vmatprep.subr.mxu0 0.0
    %2841 = vmatpush1.msra.mxu0 0.0
    %2842 = vmatprep.subr.mxu0 0.0
    %2843 = vmatpush1.msra.mxu0 0.0
    %2844 = vmatprep.subr.mxu0 0.0
    %2845 = vmatpush1.msra.mxu0 0.0
    %2846 = vmatprep.subr.mxu0 0.0
    %2847 = vmatpush1.msra.mxu0 0.0
    %2848 = vmatprep.subr.mxu0 0.0
    %2849 = vmatpush1.msra.mxu0 0.0
    %2850 = vmatprep.subr.mxu0 0.0
    %2851 = vmatpush1.msra.mxu0 0.0
    %2852 = vmatprep.subr.mxu0 0.0
    %2853 = vmatpush1.msra.mxu0 0.0
    %2854 = vmatprep.subr.mxu0 0.0
    %2855 = vmatpush1.msra.mxu0 0.0
    %2856 = vmatprep.subr.mxu0 0.0
    %2857 = vmatpush1.msra.mxu0 0.0
    %2858 = vmatprep.subr.mxu0 0.0
    %2859 = vmatpush1.msra.mxu0 0.0
    %2860 = vmatprep.mubr.f32.mxu0 0.0
    %2861 = vmatmul.mubr.f32.gmra.mrb[0].mxu0 %v2791
    %v2862 = vpop.f32.mrb[0].mxu0
    %v2863 = vadd.f32 %v2788, %v2862
    %v2864 = vpop.f32.mrb[0].mxu0
    %2865 = vmatprep.mubr.f32.mxu0 0.0
    %2866 = vmatmul.mubr.f32.gmra.mrb[0].mxu0 %v2794
    %v2867 = vpop.f32.mrb[0].mxu0
    %v2868 = vadd.f32 %v2788, %v2867
    %v2869 = vpop.f32.mrb[0].mxu0
    %2870 = vdwg.mxu0
    %v2871 = vmul.f32 %v2863, 0.5
    %v2872 = vmul.f32 %v2868, 0.5
    %v2873 = vmul.f32 %v2863, 0.70710677
    %v2874 = vmul.f32 %v2868, 0.70710677
    %v2875 = verf.f32.pop %v2873
    %v2876 = verf.f32.pop %v2874
    %v2877 = vadd.f32 %v2875, 1.0
    %v2878 = vadd.f32 %v2876, 1.0
    %v2879 = vmul.f32 %v2871, %v2877
    %v2880 = vmul.f32 %v2872, %v2878
    %v2881 = vld [vmem:[%s4] sm:$0xff]
    %v2882 = vld [vmem:[%s4 + $0x8] sm:$0xff]
    %v2883 = vld [vmem:[%s4 + $0x10] sm:$0xff]
    %v2884 = vld [vmem:[%s4 + $0x18] sm:$0xff]
    %v2885 = vld [vmem:[%s4 + $0x20] sm:$0xff]
    %v2886 = vld [vmem:[%s4 + $0x28] sm:$0xff]
    %v2887 = vld [vmem:[%s4 + $0x30] sm:$0xff]
    %v2888 = vld [vmem:[%s4 + $0x38] sm:$0xff]
    %v2889 = vld [vmem:[%s4 + $0x40] sm:$0xff]
    %v2890 = vld [vmem:[%s4 + $0x48] sm:$0xff]
    %v2891 = vld [vmem:[%s4 + $0x50] sm:$0xff]
    %v2892 = vld [vmem:[%s4 + $0x58] sm:$0xff]
    %v2893 = vld [vmem:[%s4 + $0x60] sm:$0xff]
    %v2894 = vld [vmem:[%s4 + $0x68] sm:$0xff]
    %v2895 = vld [vmem:[%s4 + $0x70] sm:$0xff]
    %v2896 = vld [vmem:[%s4 + $0x78] sm:$0xff]
    %v2897 = vlaneseq
    %v2898 = vshrl.u32 %v2897, 7
    %v2899 = vsub.s32 0, %v2898
    %v2900 = vrot.slane %v40, %v2899
    %2901 = vmatprep.subr.mxu0 0.0
    %2902 = vmatpush1.msra.mxu0 %v2881
    %2903 = vmatprep.subr.mxu0 0.0
    %2904 = vmatpush1.msra.mxu0 %v2882
    %2905 = vmatprep.subr.mxu0 0.0
    %2906 = vmatpush1.msra.mxu0 %v2883
    %2907 = vmatprep.subr.mxu0 0.0
    %2908 = vmatpush1.msra.mxu0 %v2884
    %2909 = vmatprep.subr.mxu0 0.0
    %2910 = vmatpush1.msra.mxu0 %v2885
    %2911 = vmatprep.subr.mxu0 0.0
    %2912 = vmatpush1.msra.mxu0 %v2886
    %2913 = vmatprep.subr.mxu0 0.0
    %2914 = vmatpush1.msra.mxu0 %v2887
    %2915 = vmatprep.subr.mxu0 0.0
    %2916 = vmatpush1.msra.mxu0 %v2888
    %2917 = vmatprep.subr.mxu0 0.0
    %2918 = vmatpush1.msra.mxu0 %v2889
    %2919 = vmatprep.subr.mxu0 0.0
    %2920 = vmatpush1.msra.mxu0 %v2890
    %2921 = vmatprep.subr.mxu0 0.0
    %2922 = vmatpush1.msra.mxu0 %v2891
    %2923 = vmatprep.subr.mxu0 0.0
    %2924 = vmatpush1.msra.mxu0 %v2892
    %2925 = vmatprep.subr.mxu0 0.0
    %2926 = vmatpush1.msra.mxu0 %v2893
    %2927 = vmatprep.subr.mxu0 0.0
    %2928 = vmatpush1.msra.mxu0 %v2894
    %2929 = vmatprep.subr.mxu0 0.0
    %2930 = vmatpush1.msra.mxu0 %v2895
    %2931 = vmatprep.subr.mxu0 0.0
    %2932 = vmatpush1.msra.mxu0 %v2896
    %2933 = vmatprep.subr.mxu0 0.0
    %2934 = vmatpush1.msra.mxu0 0.0
    %2935 = vmatprep.subr.mxu0 0.0
    %2936 = vmatpush1.msra.mxu0 0.0
    %2937 = vmatprep.subr.mxu0 0.0
    %2938 = vmatpush1.msra.mxu0 0.0
    %2939 = vmatprep.subr.mxu0 0.0
    %2940 = vmatpush1.msra.mxu0 0.0
    %2941 = vmatprep.subr.mxu0 0.0
    %2942 = vmatpush1.msra.mxu0 0.0
    %2943 = vmatprep.subr.mxu0 0.0
    %2944 = vmatpush1.msra.mxu0 0.0
    %2945 = vmatprep.subr.mxu0 0.0
    %2946 = vmatpush1.msra.mxu0 0.0
    %2947 = vmatprep.subr.mxu0 0.0
    %2948 = vmatpush1.msra.mxu0 0.0
    %2949 = vmatprep.subr.mxu0 0.0
    %2950 = vmatpush1.msra.mxu0 0.0
    %2951 = vmatprep.subr.mxu0 0.0
    %2952 = vmatpush1.msra.mxu0 0.0
    %2953 = vmatprep.subr.mxu0 0.0
    %2954 = vmatpush1.msra.mxu0 0.0
    %2955 = vmatprep.subr.mxu0 0.0
    %2956 = vmatpush1.msra.mxu0 0.0
    %2957 = vmatprep.subr.mxu0 0.0
    %2958 = vmatpush1.msra.mxu0 0.0
    %2959 = vmatprep.subr.mxu0 0.0
    %2960 = vmatpush1.msra.mxu0 0.0
    %2961 = vmatprep.subr.mxu0 0.0
    %2962 = vmatpush1.msra.mxu0 0.0
    %2963 = vmatprep.subr.mxu0 0.0
    %2964 = vmatpush1.msra.mxu0 0.0
    %2965 = vmatprep.mubr.f32.mxu0 0.0
    %2966 = vmatmul.mubr.f32.gmra.mrb[0].mxu0 %v2879
    %v2967 = vpop.f32.mrb[0].mxu0
    %v2968 = vadd.f32 %v2900, %v2967
    %v2969 = vpop.f32.mrb[0].mxu0
    %2970 = vmatprep.mubr.f32.mxu0 0.0
    %2971 = vmatmul.mubr.f32.gmra.mrb[0].mxu0 %v2880
    %v2972 = vpop.f32.mrb[0].mxu0
    %v2973 = vadd.f32 %v2900, %v2972
    %v2974 = vpop.f32.mrb[0].mxu0
    %2975 = vdwg.mxu0
    %v2976 = vadd.f32 %v2968, %v2739
    %v2977 = vadd.f32 %v2973, %v2740
    %2978 = vst.msk [vmem:[#allocation2] sm:$0xff] %vm41, %v2976
    %2979 = vst.msk [vmem:[#allocation2 + $0x8] sm:$0xff] %vm41, %v2977
    // Predicated region
    $region34: #{tpu_custom_call.1} parent=1 // pred_check
      _
    $region35: #{tpu_custom_call.1} parent=1 // pred_check_branch
      %2981 = sbr.rel (0) target = $region37
    $region36: #{tpu_custom_call.1} parent=1 // pred_region
      %s2983 = ssub.s32 256, 256
      %2984 = vsyncadd [#allocation3], %s2983
      %s2985 = sshll.u32 [#allocation2], 4
      %s2986 = int_to_ptr.vmem [resolvable:$true] %s2985
      %2991 = dma.vmem_to_hbm [thread:$0]  %s2986, 256, %s8, [#allocation3], 128, 128, 8
    $region37: #{tpu_custom_call.1} parent=1 // pred_fallthru
      _
    // Predicated region
    $region38: #{tpu_custom_call.1} parent=1 // pred_check
      _
    $region39: #{tpu_custom_call.1} parent=1 // pred_check_branch
      %2993 = sbr.rel (0) target = $region41
    $region40: #{tpu_custom_call.1} parent=1 // pred_region
      %s2995 = ssub.s32 1024, 1024
      %2996 = vsyncadd [#allocation5], %s2995
      %s2997 = sshll.u32 [#allocation4], 4
      %s2998 = int_to_ptr.vmem [resolvable:$true] %s2997
      %3003 = dma.vmem_to_hbm [thread:$0]  %s2998, 1024, %s9, [#allocation5], 128, 128, 8
    $region41: #{tpu_custom_call.1} parent=1 // pred_fallthru
      _
    // Predicated region
    $region42: #{tpu_custom_call.1} parent=1 // pred_check
      _
    $region43: #{tpu_custom_call.1} parent=1 // pred_check_branch
      %3005 = sbr.rel (0) target = $region45
    $region44: #{tpu_custom_call.1} parent=1 // pred_region
      %3006 = dma.done [#allocation3], 256
    $region45: #{tpu_custom_call.1} parent=1 // pred_fallthru
      _
    // Predicated region
    $region46: #{tpu_custom_call.1} parent=1 // pred_check
      _
    $region47: #{tpu_custom_call.1} parent=1 // pred_check_branch
      %3008 = sbr.rel (0) target = $region49
    $region48: #{tpu_custom_call.1} parent=1 // pred_region
      %3009 = dma.done [#allocation5], 1024
    $region49: #{tpu_custom_call.1} parent=1 // pred_fallthru
      _
    %3010 = vsyncpa [#allocation3], 1
    %3011 = vsyncpa [#allocation5], 1

</llo_original>
